<compile_context>
chip_gen: v7x
topology: tpu7x:2x2x1
jax: 0.10.0
libtpu: 0.0.40
codegen_flags: <defaults>
</compile_context>

<pallas_src>
import functools

import jax
import jax.numpy as jnp
from jax.experimental import pallas as pl
from jax.experimental.pallas import tpu as pltpu


def _round_up(x, m):
    return ((x + m - 1) // m) * m


def _vmem_capacity_bytes():
    try:
        return int(pltpu.get_tpu_info().vmem_capacity_bytes)
    except Exception:
        return 64 << 20  # conservative default (v7x per-TC VMEM)


def _vmem_budgets():
    cap = _vmem_capacity_bytes()
    # ~38 MiB ceiling on v7x (64 MiB VMEM/TC), 64 MiB on v5e/v6e (128 MiB VMEM).
    ceiling = min(int(cap * 0.60), 64 << 20)
    budget = int(ceiling * 0.70)  # what tile selection plans against
    return cap, ceiling, budget


def _finalize_vmem_limit(cap, ceiling, need_bytes):
    limit = max(ceiling, int(need_bytes) + (8 << 20))
    return int(min(int(cap * 0.9), 100 << 20, limit))


def _pick_row_tile(total, per_row_bytes, budget_bytes, row_ok):
    """Largest divisor of `total` that is legal (row_ok) and fits the budget.
    Falls back gracefully instead of returning an over-budget huge tile."""
    divisors = [t for t in range(1, total + 1) if total % t == 0]
    ok = [t for t in divisors if row_ok(t)]
    fit_ok = [t for t in ok if t * per_row_bytes <= budget_bytes]
    if fit_ok:
        return max(fit_ok)
    if ok:                 # legality first; vmem_limit is raised to cover it
        return min(ok)
    fit = [t for t in divisors if t * per_row_bytes <= budget_bytes]
    return max(fit) if fit else 1


# ---------------------------------------------------------------------------
# Conv path: 3x3, stride 2, padding 1  (9 accumulated MXU dots, bf16 stream)
# ---------------------------------------------------------------------------
def _conv_kernel(p0_ref, p1_ref, p2_ref, w_ref, b_ref, o_ref):
    # p*_ref: (tho, Wo+1, 2*C)  row-phase kh of the padded input; adjacent
    #         padded columns merged into the lane dim (even|odd columns).
    # w_ref : (9*C, tn)         (kh, kw, cin) x cout filter slab
    # b_ref : (1, tn)           f32 bias
    # o_ref : (tho*Wo, tn)
    tho, wo1, c2 = p0_ref.shape
    Wo = wo1 - 1
    C = c2 // 2
    tn = o_ref.shape[-1]

    acc = jnp.zeros((tho * Wo, tn), dtype=jnp.float32)
    tap_slices = ((0, 0), (0, C), (1, 0))  # (pair offset, lane offset) for kw=0,1,2
    t = 0
    for p_ref in (p0_ref, p1_ref, p2_ref):                 # kh = 0, 1, 2
        for col0, lane0 in tap_slices:                      # kw = 0, 1, 2
            tap = p_ref[:, pl.ds(col0, Wo), pl.ds(lane0, C)]   # (tho, Wo, C)
            acc = acc + jnp.dot(tap.reshape(tho * Wo, C),
                                w_ref[pl.ds(t * C, C), :],
                                preferred_element_type=jnp.float32)
            t += 1
    acc = acc + b_ref[...].astype(jnp.float32)
    o_ref[...] = acc.astype(o_ref.dtype)


@functools.partial(jax.jit, static_argnames=("compute_dtype",))
def conv2d_s2_p1(x_nchw, w_oihw, b, compute_dtype=jnp.bfloat16):
    """The use_conv=True op: Conv2d(C, Cout, 3, stride=2, padding=1)."""
    N, C, H, W = x_nchw.shape
    Cout = w_oihw.shape[0]
    Ho = (H + 2 - 3) // 2 + 1
    Wo = (W + 2 - 3) // 2 + 1
    M = Ho * Wo

    act_dtype = compute_dtype or x_nchw.dtype
    wt_dtype = compute_dtype or w_oihw.dtype
    out_dtype = x_nchw.dtype
    act_isz = jnp.dtype(act_dtype).itemsize
    wt_isz = jnp.dtype(wt_dtype).itemsize
    out_isz = jnp.dtype(out_dtype).itemsize

    # NCHW -> NHWC (one pass; bf16 cast fused into it).
    x = jnp.transpose(x_nchw, (0, 2, 3, 1)).astype(act_dtype)

    # padding=1 (top/left); bottom/right padded so that padded rows 0..2*Ho and
    # padded cols 0..2*Wo+1 exist (the column-pair merge needs Wo+1 pairs).
    pad_h_hi = max(0, 2 * Ho - H)
    pad_w_hi = 2 * Wo + 1 - W
    xp = jnp.pad(x, ((0, 0), (1, pad_h_hi), (1, pad_w_hi), (0, 0)))
    Wp = W + 1 + pad_w_hi                     # == 2 * (Wo + 1)

    # 3 kh row phases (stride 2 over padded H) so the kernel needs no halo rows;
    # merging each adjacent column pair into the lane dim is a free re-view.
    phases = []
    for kh in range(3):
        rows = jax.lax.slice(xp, (0, kh, 0, 0), (N, kh + 2 * Ho - 1, Wp, C),
                             (1, 2, 1, 1))                 # (N, Ho, Wp, C)
        phases.append(rows.reshape(N, Ho, Wo + 1, 2 * C))

    # weights: (Cout, Cin, 3, 3) -> (kh, kw, Cin, Cout) -> (9*C, Cout), bf16.
    w_k = jnp.transpose(w_oihw, (2, 3, 1, 0)).reshape(9 * C, Cout).astype(wt_dtype)
    b_row = b.astype(jnp.float32).reshape(1, Cout)

    # ---- tiling (generation-aware VMEM budgets) ----
    cap, ceiling, budget = _vmem_budgets()

    def wt_tile_bytes(tn):
        # weight + bias tiles are still double-buffered by the pipeline.
        return 2 * (9 * C * tn * wt_isz + tn * 4)

    # Largest Cout tile whose weight slab fits ~half the budget -> fewest
    # re-reads of the activation phases (often a single pass).
    tn_cands = [Cout] + list(range(_round_up(Cout, 128), 0, -128))
    tn = next((t for t in tn_cands if wt_tile_bytes(t) <= budget // 2), 128)
    grid_j = pl.cdiv(Cout, tn)

    per_row = (3 * 2 * (Wo + 1) * 2 * C * act_isz   # 3 phase tiles, dbl-buffered
               + Wo * tn * 4                        # f32 accumulator
               + 2 * Wo * C * 4                     # live tap temporaries
               + 2 * Wo * tn * out_isz)             # output tile, dbl-buffered
    row_budget = max(budget - wt_tile_bytes(tn), per_row)
    # (tho*Wo) % 8 == 0 (or tho == Ho) keeps the flattened output block legal.
    tho = _pick_row_tile(Ho, per_row, row_budget,
                         lambda t: (t * Wo) % 8 == 0 or t == Ho)
    tm = tho * Wo

    need = wt_tile_bytes(tn) + tho * per_row
    vmem_limit = _finalize_vmem_limit(cap, ceiling, need)

    flops = 2 * N * M * Cout * 9 * C
    bytes_accessed = int(3 * N * Ho * (Wo + 1) * 2 * C * act_isz * grid_j
                         + 9 * C * Cout * wt_isz + Cout * 4
                         + N * M * Cout * out_isz)

    out = pl.pallas_call(
        _conv_kernel,
        out_shape=jax.ShapeDtypeStruct((N, M, Cout), out_dtype),
        grid=(grid_j, N, Ho // tho),
        in_specs=[
            pl.BlockSpec((None, tho, Wo + 1, 2 * C), lambda j, n, i: (n, i, 0, 0)),
            pl.BlockSpec((None, tho, Wo + 1, 2 * C), lambda j, n, i: (n, i, 0, 0)),
            pl.BlockSpec((None, tho, Wo + 1, 2 * C), lambda j, n, i: (n, i, 0, 0)),
            pl.BlockSpec((9 * C, tn), lambda j, n, i: (0, j)),
            pl.BlockSpec((1, tn), lambda j, n, i: (0, j)),
        ],
        out_specs=pl.BlockSpec((None, tm, tn), lambda j, n, i: (n, i, j)),
        compiler_params=pltpu.CompilerParams(
            dimension_semantics=("parallel", "parallel", "parallel"),
            vmem_limit_bytes=vmem_limit),
        cost_estimate=pl.CostEstimate(flops=flops, transcendentals=0,
                                      bytes_accessed=bytes_accessed),
    )(phases[0], phases[1], phases[2], w_k, b_row)

    out = out.reshape(N, Ho, Wo, Cout)           # free re-view
    return jnp.transpose(out, (0, 3, 1, 2))      # back to NCHW


# ---------------------------------------------------------------------------
# AvgPool path: kernel_size=2, stride=2 (NCHW-native, zero transposes)
# ---------------------------------------------------------------------------
def _avgpool_kernel(x_ref, p_ref, o_ref):
    # x_ref: (tr, 2*W)   -- each row is [even H-row | odd H-row] of one (n,c,hh)
    # p_ref: (2*W, Wh)   -- constant 2x2 pooling matrix (0.25 entries)
    # o_ref: (tr, Wh)
    x = x_ref[...].astype(jnp.float32)
    y = jnp.dot(x, p_ref[...], preferred_element_type=jnp.float32)
    o_ref[...] = y.astype(o_ref.dtype)


@jax.jit
def avg_pool2d_s2(x_nchw):
    N, C, H, W = x_nchw.shape
    Hh, Wh = H // 2, W // 2
    x = x_nchw
    if (H != 2 * Hh) or (W != 2 * Wh):
        x = x[:, :, :2 * Hh, :2 * Wh]   # PyTorch floor behaviour (copy only if odd)
    W2 = 2 * Wh
    R = N * C * Hh
    x_flat = x.reshape(R, 2 * W2)       # free contiguous re-view, NCHW kept native

    # pooling matrix: column wh sums the 4 taps of its 2x2 window (scaled 0.25)
    w_in = jnp.arange(2 * W2) % W2
    pool_mat = jnp.where(w_in[:, None] // 2 == jnp.arange(Wh)[None, :],
                         jnp.float32(0.25), jnp.float32(0.0))

    cap, ceiling, budget = _vmem_budgets()
    isz = jnp.dtype(x_nchw.dtype).itemsize
    per_row = 2 * W2 * (2 * isz + 4) + Wh * (2 * isz + 4)   # dbl-buf io + f32 temps
    tr = max(8, min(_round_up(R, 8), (budget // max(per_row, 1)) // 8 * 8))
    grid_r = pl.cdiv(R, tr)
    need = 2 * (2 * W2 * Wh) * 4 + tr * per_row
    vmem_limit = _finalize_vmem_limit(cap, ceiling, need)

    out = pl.pallas_call(
        _avgpool_kernel,
        out_shape=jax.ShapeDtypeStruct((R, Wh), x_nchw.dtype),
        grid=(grid_r,),
        in_specs=[pl.BlockSpec((tr, 2 * W2), lambda i: (i, 0)),
                  pl.BlockSpec((2 * W2, Wh), lambda i: (0, 0))],
        out_specs=pl.BlockSpec((tr, Wh), lambda i: (i, 0)),
        compiler_params=pltpu.CompilerParams(
            dimension_semantics=("parallel",),
            vmem_limit_bytes=vmem_limit),
        cost_estimate=pl.CostEstimate(
            flops=2 * R * 2 * W2 * Wh, transcendentals=0,
            bytes_accessed=int(R * 2 * W2 * isz + R * Wh * isz + 2 * W2 * Wh * 4)),
    )(x_flat, pool_mat)
    return out.reshape(N, C, Hh, Wh)


# ---------------------------------------------------------------------------
# Module wrapper
# ---------------------------------------------------------------------------
class Downsample:
    """JAX/Pallas port of modelscope_t2v Downsample (dims=2)."""

    def __init__(self, channels, use_conv, dims=2, out_channels=None,
                 padding=1, key=None, compute_dtype=jnp.bfloat16):
        assert dims == 2, "only the dims=2 path is implemented"
        assert padding == 1
        self.channels = channels
        self.out_channels = out_channels or channels
        self.use_conv = use_conv
        self.compute_dtype = compute_dtype   # None -> full f32 compute
        if use_conv:
            key = key if key is not None else jax.random.PRNGKey(0)
            kw_, kb_ = jax.random.split(key)
            fan_in = channels * 3 * 3
            bound = 1.0 / (fan_in ** 0.5)    # PyTorch Conv2d default init scale
            self.weight = jax.random.uniform(
                kw_, (self.out_channels, channels, 3, 3), jnp.float32, -bound, bound)
            self.bias = jax.random.uniform(
                kb_, (self.out_channels,), jnp.float32, -bound, bound)
        else:
            assert self.channels == self.out_channels

    def __call__(self, x_nchw):
        assert x_nchw.shape[1] == self.channels
        if self.use_conv:
            return conv2d_s2_p1(x_nchw, self.weight, self.bias,
                                compute_dtype=self.compute_dtype)
        return avg_pool2d_s2(x_nchw)


# ---------------------------------------------------------------------------
if __name__ == "__main__":
    key = jax.random.PRNGKey(0)
    kx, kp = jax.random.split(key)
    N, C, H, W = 2, 4, 16, 16
    x = jax.random.normal(kx, (N, C, H, W), jnp.float32)

    # --- use_conv=True path (bf16 streaming, f32 accumulate) ---
    ds_conv = Downsample(C, use_conv=True, dims=2, key=kp)
    y = jax.block_until_ready(ds_conv(x))
    assert y.shape == (N, C, H // 2, W // 2), y.shape

    # reference with the same bf16 rounding of activations / weights
    xb = x.astype(jnp.bfloat16).astype(jnp.float32)
    wb = ds_conv.weight.astype(jnp.bfloat16).astype(jnp.float32)
    y_ref = jax.lax.conv_general_dilated(
        xb, wb, window_strides=(2, 2), padding=((1, 1), (1, 1)),
        dimension_numbers=("NCHW", "OIHW", "NCHW"),
        precision=jax.lax.Precision.HIGHEST) + ds_conv.bias.reshape(1, -1, 1, 1)
    err = float(jnp.max(jnp.abs(y - y_ref)))
    assert jnp.allclose(y, y_ref, atol=2e-3, rtol=2e-3), err

    # --- use_conv=False path (AvgPool2d(2, 2)) ---
    ds_pool = Downsample(C, use_conv=False, dims=2)
    z = jax.block_until_ready(ds_pool(x))
    assert z.shape == (N, C, H // 2, W // 2), z.shape
    z_ref = x.reshape(N, C, H // 2, 2, W // 2, 2).mean(axis=(3, 5))
    errz = float(jnp.max(jnp.abs(z - z_ref)))
    # loose-ish tolerance: the 2x2 average goes through an f32 MXU matmul
    assert jnp.allclose(z, z_ref, atol=2e-2, rtol=2e-2), errz

    print("KERNEL_OK")
</pallas_src>

<mosaic_0001>
module attributes {stable_mosaic.version = 11 : i64} {
  func.func @_conv_kernel(%arg0: i32, %arg1: i32, %arg2: i32, %arg3: memref<1x8x9x8xbf16, #tpu.memory_space<vmem>>, %arg4: memref<1x8x9x8xbf16, #tpu.memory_space<vmem>>, %arg5: memref<1x8x9x8xbf16, #tpu.memory_space<vmem>>, %arg6: memref<36x4xbf16, #tpu.memory_space<vmem>>, %arg7: memref<1x4xf32, #tpu.memory_space<vmem>>, %arg8: memref<1x64x4xf32, #tpu.memory_space<vmem>>) attributes {dimension_semantics = [#tpu.dimension_semantics<parallel>, #tpu.dimension_semantics<parallel>, #tpu.dimension_semantics<parallel>], iteration_bounds = array<i64: 1, 2, 1>, scalar_prefetch = 0 : i64, scratch_operands = 0 : i64, tpu.core_type = #tpu.core_type<tc>, window_params = [{transform_indices = @transform_0, window_bounds = array<i64: 1, 8, 9, 8>}, {transform_indices = @transform_1, window_bounds = array<i64: 1, 8, 9, 8>}, {transform_indices = @transform_2, window_bounds = array<i64: 1, 8, 9, 8>}, {transform_indices = @transform_3, window_bounds = array<i64: 36, 4>}, {transform_indices = @transform_4, window_bounds = array<i64: 1, 4>}, {transform_indices = @transform_5, window_bounds = array<i64: 1, 64, 4>}]} {
    %cst = arith.constant 0.000000e+00 : f32
    %0 = vector.broadcast %cst : f32 to vector<64x4xf32>
    %c0 = arith.constant 0 : index
    %c0_0 = arith.constant 0 : index
    %c0_1 = arith.constant 0 : index
    %c0_2 = arith.constant 0 : index
    %1 = vector.load %arg3[%c0, %c0_0, %c0_1, %c0_2] : memref<1x8x9x8xbf16, #tpu.memory_space<vmem>>, vector<1x8x8x4xbf16>
    %2 = vector.shape_cast %1 : vector<1x8x8x4xbf16> to vector<8x8x4xbf16>
    %3 = vector.shape_cast %2 : vector<8x8x4xbf16> to vector<64x4xbf16>
    %c0_3 = arith.constant 0 : index
    %c0_4 = arith.constant 0 : index
    %4 = vector.load %arg6[%c0_3, %c0_4] : memref<36x4xbf16, #tpu.memory_space<vmem>>, vector<4x4xbf16>
    %cst_5 = arith.constant dense<0.000000e+00> : vector<64x4xf32>
    %5 = tpu.matmul %3, %4, %cst_5 {dimension_numbers = #tpu.dot_dimension_numbers<[1], [0], [0], [1], [0, 0, 1, 1], [], []>} : vector<64x4xbf16>, vector<4x4xbf16>, vector<64x4xf32> -> vector<64x4xf32>
    %6 = arith.addf %0, %5 : vector<64x4xf32>
    %c0_6 = arith.constant 0 : index
    %c0_7 = arith.constant 0 : index
    %c0_8 = arith.constant 0 : index
    %c4 = arith.constant 4 : index
    %7 = vector.load %arg3[%c0_6, %c0_7, %c0_8, %c4] : memref<1x8x9x8xbf16, #tpu.memory_space<vmem>>, vector<1x8x8x4xbf16>
    %8 = vector.shape_cast %7 : vector<1x8x8x4xbf16> to vector<8x8x4xbf16>
    %9 = vector.shape_cast %8 : vector<8x8x4xbf16> to vector<64x4xbf16>
    %c4_9 = arith.constant 4 : index
    %c0_10 = arith.constant 0 : index
    %10 = vector.load %arg6[%c4_9, %c0_10] : memref<36x4xbf16, #tpu.memory_space<vmem>>, vector<4x4xbf16>
    %cst_11 = arith.constant dense<0.000000e+00> : vector<64x4xf32>
    %11 = tpu.matmul %9, %10, %cst_11 {dimension_numbers = #tpu.dot_dimension_numbers<[1], [0], [0], [1], [0, 0, 1, 1], [], []>} : vector<64x4xbf16>, vector<4x4xbf16>, vector<64x4xf32> -> vector<64x4xf32>
    %12 = arith.addf %6, %11 : vector<64x4xf32>
    %c0_12 = arith.constant 0 : index
    %c0_13 = arith.constant 0 : index
    %c1 = arith.constant 1 : index
    %c0_14 = arith.constant 0 : index
    %13 = vector.load %arg3[%c0_12, %c0_13, %c1, %c0_14] : memref<1x8x9x8xbf16, #tpu.memory_space<vmem>>, vector<1x8x8x4xbf16>
    %14 = vector.shape_cast %13 : vector<1x8x8x4xbf16> to vector<8x8x4xbf16>
    %15 = vector.shape_cast %14 : vector<8x8x4xbf16> to vector<64x4xbf16>
    %c8 = arith.constant 8 : index
    %c0_15 = arith.constant 0 : index
    %16 = vector.load %arg6[%c8, %c0_15] : memref<36x4xbf16, #tpu.memory_space<vmem>>, vector<4x4xbf16>
    %cst_16 = arith.constant dense<0.000000e+00> : vector<64x4xf32>
    %17 = tpu.matmul %15, %16, %cst_16 {dimension_numbers = #tpu.dot_dimension_numbers<[1], [0], [0], [1], [0, 0, 1, 1], [], []>} : vector<64x4xbf16>, vector<4x4xbf16>, vector<64x4xf32> -> vector<64x4xf32>
    %18 = arith.addf %12, %17 : vector<64x4xf32>
    %c0_17 = arith.constant 0 : index
    %c0_18 = arith.constant 0 : index
    %c0_19 = arith.constant 0 : index
    %c0_20 = arith.constant 0 : index
    %19 = vector.load %arg4[%c0_17, %c0_18, %c0_19, %c0_20] : memref<1x8x9x8xbf16, #tpu.memory_space<vmem>>, vector<1x8x8x4xbf16>
    %20 = vector.shape_cast %19 : vector<1x8x8x4xbf16> to vector<8x8x4xbf16>
    %21 = vector.shape_cast %20 : vector<8x8x4xbf16> to vector<64x4xbf16>
    %c12 = arith.constant 12 : index
    %c0_21 = arith.constant 0 : index
    %22 = vector.load %arg6[%c12, %c0_21] : memref<36x4xbf16, #tpu.memory_space<vmem>>, vector<4x4xbf16>
    %cst_22 = arith.constant dense<0.000000e+00> : vector<64x4xf32>
    %23 = tpu.matmul %21, %22, %cst_22 {dimension_numbers = #tpu.dot_dimension_numbers<[1], [0], [0], [1], [0, 0, 1, 1], [], []>} : vector<64x4xbf16>, vector<4x4xbf16>, vector<64x4xf32> -> vector<64x4xf32>
    %24 = arith.addf %18, %23 : vector<64x4xf32>
    %c0_23 = arith.constant 0 : index
    %c0_24 = arith.constant 0 : index
    %c0_25 = arith.constant 0 : index
    %c4_26 = arith.constant 4 : index
    %25 = vector.load %arg4[%c0_23, %c0_24, %c0_25, %c4_26] : memref<1x8x9x8xbf16, #tpu.memory_space<vmem>>, vector<1x8x8x4xbf16>
    %26 = vector.shape_cast %25 : vector<1x8x8x4xbf16> to vector<8x8x4xbf16>
    %27 = vector.shape_cast %26 : vector<8x8x4xbf16> to vector<64x4xbf16>
    %c16 = arith.constant 16 : index
    %c0_27 = arith.constant 0 : index
    %28 = vector.load %arg6[%c16, %c0_27] : memref<36x4xbf16, #tpu.memory_space<vmem>>, vector<4x4xbf16>
    %cst_28 = arith.constant dense<0.000000e+00> : vector<64x4xf32>
    %29 = tpu.matmul %27, %28, %cst_28 {dimension_numbers = #tpu.dot_dimension_numbers<[1], [0], [0], [1], [0, 0, 1, 1], [], []>} : vector<64x4xbf16>, vector<4x4xbf16>, vector<64x4xf32> -> vector<64x4xf32>
    %30 = arith.addf %24, %29 : vector<64x4xf32>
    %c0_29 = arith.constant 0 : index
    %c0_30 = arith.constant 0 : index
    %c1_31 = arith.constant 1 : index
    %c0_32 = arith.constant 0 : index
    %31 = vector.load %arg4[%c0_29, %c0_30, %c1_31, %c0_32] : memref<1x8x9x8xbf16, #tpu.memory_space<vmem>>, vector<1x8x8x4xbf16>
    %32 = vector.shape_cast %31 : vector<1x8x8x4xbf16> to vector<8x8x4xbf16>
    %33 = vector.shape_cast %32 : vector<8x8x4xbf16> to vector<64x4xbf16>
    %c20 = arith.constant 20 : index
    %c0_33 = arith.constant 0 : index
    %34 = vector.load %arg6[%c20, %c0_33] : memref<36x4xbf16, #tpu.memory_space<vmem>>, vector<4x4xbf16>
    %cst_34 = arith.constant dense<0.000000e+00> : vector<64x4xf32>
    %35 = tpu.matmul %33, %34, %cst_34 {dimension_numbers = #tpu.dot_dimension_numbers<[1], [0], [0], [1], [0, 0, 1, 1], [], []>} : vector<64x4xbf16>, vector<4x4xbf16>, vector<64x4xf32> -> vector<64x4xf32>
    %36 = arith.addf %30, %35 : vector<64x4xf32>
    %c0_35 = arith.constant 0 : index
    %c0_36 = arith.constant 0 : index
    %c0_37 = arith.constant 0 : index
    %c0_38 = arith.constant 0 : index
    %37 = vector.load %arg5[%c0_35, %c0_36, %c0_37, %c0_38] : memref<1x8x9x8xbf16, #tpu.memory_space<vmem>>, vector<1x8x8x4xbf16>
    %38 = vector.shape_cast %37 : vector<1x8x8x4xbf16> to vector<8x8x4xbf16>
    %39 = vector.shape_cast %38 : vector<8x8x4xbf16> to vector<64x4xbf16>
    %c24 = arith.constant 24 : index
    %c0_39 = arith.constant 0 : index
    %40 = vector.load %arg6[%c24, %c0_39] : memref<36x4xbf16, #tpu.memory_space<vmem>>, vector<4x4xbf16>
    %cst_40 = arith.constant dense<0.000000e+00> : vector<64x4xf32>
    %41 = tpu.matmul %39, %40, %cst_40 {dimension_numbers = #tpu.dot_dimension_numbers<[1], [0], [0], [1], [0, 0, 1, 1], [], []>} : vector<64x4xbf16>, vector<4x4xbf16>, vector<64x4xf32> -> vector<64x4xf32>
    %42 = arith.addf %36, %41 : vector<64x4xf32>
    %c0_41 = arith.constant 0 : index
    %c0_42 = arith.constant 0 : index
    %c0_43 = arith.constant 0 : index
    %c4_44 = arith.constant 4 : index
    %43 = vector.load %arg5[%c0_41, %c0_42, %c0_43, %c4_44] : memref<1x8x9x8xbf16, #tpu.memory_space<vmem>>, vector<1x8x8x4xbf16>
    %44 = vector.shape_cast %43 : vector<1x8x8x4xbf16> to vector<8x8x4xbf16>
    %45 = vector.shape_cast %44 : vector<8x8x4xbf16> to vector<64x4xbf16>
    %c28 = arith.constant 28 : index
    %c0_45 = arith.constant 0 : index
    %46 = vector.load %arg6[%c28, %c0_45] : memref<36x4xbf16, #tpu.memory_space<vmem>>, vector<4x4xbf16>
    %cst_46 = arith.constant dense<0.000000e+00> : vector<64x4xf32>
    %47 = tpu.matmul %45, %46, %cst_46 {dimension_numbers = #tpu.dot_dimension_numbers<[1], [0], [0], [1], [0, 0, 1, 1], [], []>} : vector<64x4xbf16>, vector<4x4xbf16>, vector<64x4xf32> -> vector<64x4xf32>
    %48 = arith.addf %42, %47 : vector<64x4xf32>
    %c0_47 = arith.constant 0 : index
    %c0_48 = arith.constant 0 : index
    %c1_49 = arith.constant 1 : index
    %c0_50 = arith.constant 0 : index
    %49 = vector.load %arg5[%c0_47, %c0_48, %c1_49, %c0_50] : memref<1x8x9x8xbf16, #tpu.memory_space<vmem>>, vector<1x8x8x4xbf16>
    %50 = vector.shape_cast %49 : vector<1x8x8x4xbf16> to vector<8x8x4xbf16>
    %51 = vector.shape_cast %50 : vector<8x8x4xbf16> to vector<64x4xbf16>
    %c32 = arith.constant 32 : index
    %c0_51 = arith.constant 0 : index
    %52 = vector.load %arg6[%c32, %c0_51] : memref<36x4xbf16, #tpu.memory_space<vmem>>, vector<4x4xbf16>
    %cst_52 = arith.constant dense<0.000000e+00> : vector<64x4xf32>
    %53 = tpu.matmul %51, %52, %cst_52 {dimension_numbers = #tpu.dot_dimension_numbers<[1], [0], [0], [1], [0, 0, 1, 1], [], []>} : vector<64x4xbf16>, vector<4x4xbf16>, vector<64x4xf32> -> vector<64x4xf32>
    %54 = arith.addf %48, %53 : vector<64x4xf32>
    %c0_53 = arith.constant 0 : index
    %c0_54 = arith.constant 0 : index
    %55 = vector.load %arg7[%c0_53, %c0_54] : memref<1x4xf32, #tpu.memory_space<vmem>>, vector<1x4xf32>
    %56 = vector.broadcast %55 : vector<1x4xf32> to vector<64x4xf32>
    %57 = arith.addf %54, %56 : vector<64x4xf32>
    %c0_55 = arith.constant 0 : index
    %c0_56 = arith.constant 0 : index
    %c0_57 = arith.constant 0 : index
    %58 = vector.load %arg8[%c0_55, %c0_56, %c0_57] : memref<1x64x4xf32, #tpu.memory_space<vmem>>, vector<1x64x4xf32>
    %59 = vector.shape_cast %58 : vector<1x64x4xf32> to vector<64x4xf32>
    %60 = vector.shape_cast %57 : vector<64x4xf32> to vector<1x64x4xf32>
    tpu.vector_store %arg8[%c0_55, %c0_56, %c0_57], %60 {strides = array<i32>} : memref<1x64x4xf32, #tpu.memory_space<vmem>>, vector<1x64x4xf32>,
    return
  }
  func.func @transform_0(%arg0: i32, %arg1: i32, %arg2: i32) -> (i32, i32, i32, i32) {
    %c0_i32 = arith.constant 0 : i32
    %c0_i32_0 = arith.constant 0 : i32
    %c0_i32_1 = arith.constant 0 : i32
    return %arg1, %arg2, %c0_i32, %c0_i32_0 : i32, i32, i32, i32
  }
  func.func @transform_1(%arg0: i32, %arg1: i32, %arg2: i32) -> (i32, i32, i32, i32) {
    %c0_i32 = arith.constant 0 : i32
    %c0_i32_0 = arith.constant 0 : i32
    %c0_i32_1 = arith.constant 0 : i32
    return %arg1, %arg2, %c0_i32, %c0_i32_0 : i32, i32, i32, i32
  }
  func.func @transform_2(%arg0: i32, %arg1: i32, %arg2: i32) -> (i32, i32, i32, i32) {
    %c0_i32 = arith.constant 0 : i32
    %c0_i32_0 = arith.constant 0 : i32
    %c0_i32_1 = arith.constant 0 : i32
    return %arg1, %arg2, %c0_i32, %c0_i32_0 : i32, i32, i32, i32
  }
  func.func @transform_3(%arg0: i32, %arg1: i32, %arg2: i32) -> (i32, i32) {
    %c0_i32 = arith.constant 0 : i32
    %c0_i32_0 = arith.constant 0 : i32
    return %c0_i32, %arg0 : i32, i32
  }
  func.func @transform_4(%arg0: i32, %arg1: i32, %arg2: i32) -> (i32, i32) {
    %c0_i32 = arith.constant 0 : i32
    %c0_i32_0 = arith.constant 0 : i32
    return %c0_i32, %arg0 : i32, i32
  }
  func.func @transform_5(%arg0: i32, %arg1: i32, %arg2: i32) -> (i32, i32, i32) {
    %c0_i32 = arith.constant 0 : i32
    return %arg1, %arg2, %arg0 : i32, i32, i32
  }
}

</mosaic_0001>

<llo_original>
// kernel: conv2d_s2_p1.1
$region0: #{conv2d_s2_p1.1}
  #allocation0 [shape = 'u32[]', space=smem, size = 0x4, offset = 0x4, fixed_abs, tag = 'smem constant byte address 0x4 - core index']
  #allocation1 [shape = 'u32[144,128]{1,0:T(1,128)}', space=vmem, size = 0x12000, scoped, tag = 'internal scratch']
  %s0 = inlined_call_operand.vmem [shape: bf16[2,8,9,8], index: 0, kind: input, shape index: {}]
  %s1 = inlined_call_operand.vmem [shape: bf16[2,8,9,8], index: 1, kind: input, shape index: {}]
  %s2 = inlined_call_operand.vmem [shape: bf16[2,8,9,8], index: 2, kind: input, shape index: {}]
  %s3 = inlined_call_operand.vmem [shape: bf16[36,4], index: 3, kind: input, shape index: {}]
  %s4 = inlined_call_operand.vmem [shape: f32[1,4], index: 4, kind: input, shape index: {}]
  %s5 = inlined_call_operand.vmem [shape: f32[2,64,4], index: 5, kind: output, shape index: {}]
  %s6 = sld [smem:[#allocation0]]
  $region53: #{conv2d_s2_p1.1} parent=0
    _
  %s8 = ssub.s32 1, %s6
  %s9 = scalar_select 0, %s8, %s6
  loop: start=0, step=1, limit=4
  $region2: #{conv2d_s2_p1.1} parent=0 // loop_pre_header
    _
  $region3: #{conv2d_s2_p1.1} parent=0 // loop_header
    %s11 = sphi 0, %s15
    %p12 = scmp.ge.s32.totalorder %s11, 4
    %s18 = sphi 0, %s37
    %s19 = sphi 0, %s33
    %s20 = sphi 0, %s29
    %s21 = sphi 0, %s18
    %s22 = sphi 0, %s19
    %s23 = sphi 0, %s20
    %s24 = sphi 0, %s21
    %s25 = sphi 0, %s22
    %s26 = sphi 0, %s23
    %s42 = sphi 0, %s44
    %s45 = sphi 0, %s42
    %s46 = sphi 0, %s45
    %s62 = sphi 0, %s46
    %s70 = sphi 0, %s72
    %s73 = sphi 0, %s70
    %s74 = sphi 0, %s73
    %s90 = sphi 0, %s74
    %s98 = sphi 0, %s100
    %s101 = sphi 0, %s98
    %s102 = sphi 0, %s101
    %s118 = sphi 0, %s102
    %s124 = sphi 0, %s126
    %s127 = sphi 0, %s124
    %s128 = sphi 0, %s127
    %s144 = sphi 0, %s128
    %s150 = sphi 0, %s152
    %s153 = sphi 0, %s150
    %s154 = sphi 0, %s153
    %s170 = sphi 0, %s154
    %s180 = sphi 0, %s182
    %s183 = sphi 0, %s180
    %s184 = sphi 0, %s183
    %s200 = sphi 0, %s184
  $region4: #{conv2d_s2_p1.1} parent=0 // loop_header_branch
    %14 = sbr.rel (%p12) target = $region8
  $region5: #{conv2d_s2_p1.1} parent=0 // loop_body
    %s16 = ssub.s32 %s11, 1
    %s17 = ssub.s32 %s11, 2
    %s27 = sadd.s32 1, %s20
    %p28 = scmp.ge.s32.totalorder %s27, 1
    %s29 = scalar_select %p28, 0, %s27
    %s30 = sadd.s32 1, %s19
    %s31 = scalar_select %p28, %s30, %s19
    %p32 = scmp.ge.s32.totalorder %s31, 2
    %s33 = scalar_select %p32, 0, %s31
    %s34 = sadd.s32 1, %s18
    %s35 = scalar_select %p32, %s34, %s18
    %p36 = scmp.ge.s32.totalorder %s35, 1
    %s37 = scalar_select %p36, 0, %s35
    %s38 = ssub.s32 %s19, %s33
    %s39 = ssub.s32 %s20, %s29
    %s40 = sor.u32 %s38, %s39
    %p41 = scmp.eq.s32.totalorder %s40, 0
    %s43 = sadd.s32 %s42, 1
    %s44 = scalar_select %p41, %s42, %s43
    %p47 = pneg %p41
    %p48 = scmp.eq.s32.totalorder %s11, 1
    %p49 = por %p47, %p48
    %p50 = scmp.ne.s32.totalorder %s42, %s45
    %p51 = scmp.eq.s32.totalorder %s11, 0
    %p52 = por %p50, %p51
    %p53 = scmp.ne.s32.totalorder %s42, %s45
    %p54 = scmp.eq.s32.totalorder %s16, 1
    %p55 = por %p53, %p54
    %p56 = scmp.ne.s32.totalorder %s45, %s46
    %p57 = scmp.eq.s32.totalorder %s16, 0
    %p58 = por %p56, %p57
    %p59 = scmp.ne.s32.totalorder %s45, %s46
    %p60 = scmp.eq.s32.totalorder %s17, 1
    %p61 = por %p59, %p60
    %p63 = scmp.ne.s32.totalorder %s46, %s62
    %p64 = scmp.eq.s32.totalorder %s17, 0
    %p65 = por %p63, %p64
    %s66 = ssub.s32 %s19, %s33
    %s67 = ssub.s32 %s20, %s29
    %s68 = sor.u32 %s66, %s67
    %p69 = scmp.eq.s32.totalorder %s68, 0
    %s71 = sadd.s32 %s70, 1
    %s72 = scalar_select %p69, %s70, %s71
    %p75 = pneg %p69
    %p76 = scmp.eq.s32.totalorder %s11, 1
    %p77 = por %p75, %p76
    %p78 = scmp.ne.s32.totalorder %s70, %s73
    %p79 = scmp.eq.s32.totalorder %s11, 0
    %p80 = por %p78, %p79
    %p81 = scmp.ne.s32.totalorder %s70, %s73
    %p82 = scmp.eq.s32.totalorder %s16, 1
    %p83 = por %p81, %p82
    %p84 = scmp.ne.s32.totalorder %s73, %s74
    %p85 = scmp.eq.s32.totalorder %s16, 0
    %p86 = por %p84, %p85
    %p87 = scmp.ne.s32.totalorder %s73, %s74
    %p88 = scmp.eq.s32.totalorder %s17, 1
    %p89 = por %p87, %p88
    %p91 = scmp.ne.s32.totalorder %s74, %s90
    %p92 = scmp.eq.s32.totalorder %s17, 0
    %p93 = por %p91, %p92
    %s94 = ssub.s32 %s19, %s33
    %s95 = ssub.s32 %s20, %s29
    %s96 = sor.u32 %s94, %s95
    %p97 = scmp.eq.s32.totalorder %s96, 0
    %s99 = sadd.s32 %s98, 1
    %s100 = scalar_select %p97, %s98, %s99
    %p103 = pneg %p97
    %p104 = scmp.eq.s32.totalorder %s11, 1
    %p105 = por %p103, %p104
    %p106 = scmp.ne.s32.totalorder %s98, %s101
    %p107 = scmp.eq.s32.totalorder %s11, 0
    %p108 = por %p106, %p107
    %p109 = scmp.ne.s32.totalorder %s98, %s101
    %p110 = scmp.eq.s32.totalorder %s16, 1
    %p111 = por %p109, %p110
    %p112 = scmp.ne.s32.totalorder %s101, %s102
    %p113 = scmp.eq.s32.totalorder %s16, 0
    %p114 = por %p112, %p113
    %p115 = scmp.ne.s32.totalorder %s101, %s102
    %p116 = scmp.eq.s32.totalorder %s17, 1
    %p117 = por %p115, %p116
    %p119 = scmp.ne.s32.totalorder %s102, %s118
    %p120 = scmp.eq.s32.totalorder %s17, 0
    %p121 = por %p119, %p120
    %s122 = ssub.s32 %s18, %s37
    %p123 = scmp.eq.s32.totalorder %s122, 0
    %s125 = sadd.s32 %s124, 1
    %s126 = scalar_select %p123, %s124, %s125
    %p129 = pneg %p123
    %p130 = scmp.eq.s32.totalorder %s11, 1
    %p131 = por %p129, %p130
    %p132 = scmp.ne.s32.totalorder %s124, %s127
    %p133 = scmp.eq.s32.totalorder %s11, 0
    %p134 = por %p132, %p133
    %p135 = scmp.ne.s32.totalorder %s124, %s127
    %p136 = scmp.eq.s32.totalorder %s16, 1
    %p137 = por %p135, %p136
    %p138 = scmp.ne.s32.totalorder %s127, %s128
    %p139 = scmp.eq.s32.totalorder %s16, 0
    %p140 = por %p138, %p139
    %p141 = scmp.ne.s32.totalorder %s127, %s128
    %p142 = scmp.eq.s32.totalorder %s17, 1
    %p143 = por %p141, %p142
    %p145 = scmp.ne.s32.totalorder %s128, %s144
    %p146 = scmp.eq.s32.totalorder %s17, 0
    %p147 = por %p145, %p146
    %s148 = ssub.s32 %s18, %s37
    %p149 = scmp.eq.s32.totalorder %s148, 0
    %s151 = sadd.s32 %s150, 1
    %s152 = scalar_select %p149, %s150, %s151
    %p155 = pneg %p149
    %p156 = scmp.eq.s32.totalorder %s11, 1
    %p157 = por %p155, %p156
    %p158 = scmp.ne.s32.totalorder %s150, %s153
    %p159 = scmp.eq.s32.totalorder %s11, 0
    %p160 = por %p158, %p159
    %p161 = scmp.ne.s32.totalorder %s150, %s153
    %p162 = scmp.eq.s32.totalorder %s16, 1
    %p163 = por %p161, %p162
    %p164 = scmp.ne.s32.totalorder %s153, %s154
    %p165 = scmp.eq.s32.totalorder %s16, 0
    %p166 = por %p164, %p165
    %p167 = scmp.ne.s32.totalorder %s153, %s154
    %p168 = scmp.eq.s32.totalorder %s17, 1
    %p169 = por %p167, %p168
    %p171 = scmp.ne.s32.totalorder %s154, %s170
    %p172 = scmp.eq.s32.totalorder %s17, 0
    %p173 = por %p171, %p172
    %s174 = ssub.s32 %s19, %s33
    %s175 = ssub.s32 %s20, %s29
    %s176 = sor.u32 %s174, %s175
    %s177 = ssub.s32 %s18, %s37
    %s178 = sor.u32 %s176, %s177
    %p179 = scmp.eq.s32.totalorder %s178, 0
    %s181 = sadd.s32 %s180, 1
    %s182 = scalar_select %p179, %s180, %s181
    %p185 = pneg %p179
    %p186 = scmp.eq.s32.totalorder %s11, 1
    %p187 = por %p185, %p186
    %p188 = scmp.ne.s32.totalorder %s180, %s183
    %p189 = scmp.eq.s32.totalorder %s11, 0
    %p190 = por %p188, %p189
    %p191 = scmp.ne.s32.totalorder %s180, %s183
    %p192 = scmp.eq.s32.totalorder %s16, 1
    %p193 = por %p191, %p192
    %p194 = scmp.ne.s32.totalorder %s183, %s184
    %p195 = scmp.eq.s32.totalorder %s16, 0
    %p196 = por %p194, %p195
    %p197 = scmp.ne.s32.totalorder %s183, %s184
    %p198 = scmp.eq.s32.totalorder %s17, 1
    %p199 = por %p197, %p198
    %p201 = scmp.ne.s32.totalorder %s184, %s200
    %p202 = scmp.eq.s32.totalorder %s17, 0
    %p203 = por %p201, %p202
    %p204 = scmp.le.s32.totalorder 1, %s11
    %p205 = scmp.lt.s32.totalorder %s11, 3
    %p206 = pnand %p204, %p205
    %p207 = pneg %p206
    // Predicated region
    $region9: #{conv2d_s2_p1.1} parent=5 // pred_check
      _
    $region10: #{conv2d_s2_p1.1} parent=5 // pred_check_branch
      %209 = sbr.rel (%p206) target = $region12
    $region11: #{conv2d_s2_p1.1} parent=5 // pred_region
      %s210 = ssub.s32 %s11, 1
      // Predicated region
      $region13: #{conv2d_s2_p1.1} parent=11 // pred_check
        %p211 = pneg %p140
      $region14: #{conv2d_s2_p1.1} parent=11 // pred_check_branch
        %213 = sbr.rel (%p211) target = $region16
      $region15: #{conv2d_s2_p1.1} parent=11 // pred_region
        %p214 = scmp.lt.s32.totalorder %s21, 0
        %s215 = scalar_select %p214, %s21, 0
        %s216 = smul.addr %s215, 4
        %s217 = scalar_lea.vmem %s3, %s216
      $region16: #{conv2d_s2_p1.1} parent=11 // pred_fallthru
        _
      // Predicated region
      $region17: #{conv2d_s2_p1.1} parent=11 // pred_check
        %p218 = pneg %p166
      $region18: #{conv2d_s2_p1.1} parent=11 // pred_check_branch
        %220 = sbr.rel (%p218) target = $region20
      $region19: #{conv2d_s2_p1.1} parent=11 // pred_region
        %p221 = scmp.lt.s32.totalorder %s21, 0
        %s222 = scalar_select %p221, %s21, 0
        %s223 = scalar_lea.vmem %s4, %s222
      $region20: #{conv2d_s2_p1.1} parent=11 // pred_fallthru
        _
    $region12: #{conv2d_s2_p1.1} parent=5 // pred_fallthru
      _
    %p224 = scmp.lt.s32.totalorder %s11, 2
    // Predicated region
    $region21: #{conv2d_s2_p1.1} parent=5 // pred_check
      %p225 = pneg %p224
    $region22: #{conv2d_s2_p1.1} parent=5 // pred_check_branch
      %227 = sbr.rel (%p225) target = $region24
    $region23: #{conv2d_s2_p1.1} parent=5 // pred_region
      // Predicated region
      $region25: #{conv2d_s2_p1.1} parent=23 // pred_check
        %p228 = pneg %p52
      $region26: #{conv2d_s2_p1.1} parent=23 // pred_check_branch
        %230 = sbr.rel (%p228) target = $region28
      $region27: #{conv2d_s2_p1.1} parent=23 // pred_region
        %s231 = smul.u32 8, %s20
        %p232 = scmp.lt.s32.totalorder %s19, 1
        %s233 = scalar_select %p232, %s19, 1
        %p234 = scmp.lt.s32.totalorder %s231, 7
        %s235 = scalar_select %p234, %s231, 7
        %s236 = smul.addr %s235, 2
        %s237 = smul.addr %s233, 16
        %s238 = sadd.s32 %s236, %s237
        %s239 = smul.addr %s238, 4
        %s240 = scalar_lea.vmem %s0, %s239
        %s241 = smul.u32 8, %s20
      $region28: #{conv2d_s2_p1.1} parent=23 // pred_fallthru
        _
      // Predicated region
      $region29: #{conv2d_s2_p1.1} parent=23 // pred_check
        %p242 = pneg %p80
      $region30: #{conv2d_s2_p1.1} parent=23 // pred_check_branch
        %244 = sbr.rel (%p242) target = $region32
      $region31: #{conv2d_s2_p1.1} parent=23 // pred_region
        %s245 = smul.u32 8, %s20
        %p246 = scmp.lt.s32.totalorder %s19, 1
        %s247 = scalar_select %p246, %s19, 1
        %p248 = scmp.lt.s32.totalorder %s245, 7
        %s249 = scalar_select %p248, %s245, 7
        %s250 = smul.addr %s249, 2
        %s251 = smul.addr %s247, 16
        %s252 = sadd.s32 %s250, %s251
        %s253 = smul.addr %s252, 4
        %s254 = scalar_lea.vmem %s1, %s253
        %s255 = smul.u32 8, %s20
      $region32: #{conv2d_s2_p1.1} parent=23 // pred_fallthru
        _
      // Predicated region
      $region33: #{conv2d_s2_p1.1} parent=23 // pred_check
        %p256 = pneg %p108
      $region34: #{conv2d_s2_p1.1} parent=23 // pred_check_branch
        %258 = sbr.rel (%p256) target = $region36
      $region35: #{conv2d_s2_p1.1} parent=23 // pred_region
        %s259 = smul.u32 8, %s20
        %p260 = scmp.lt.s32.totalorder %s19, 1
        %s261 = scalar_select %p260, %s19, 1
        %p262 = scmp.lt.s32.totalorder %s259, 7
        %s263 = scalar_select %p262, %s259, 7
        %s264 = smul.addr %s263, 2
        %s265 = smul.addr %s261, 16
        %s266 = sadd.s32 %s264, %s265
        %s267 = smul.addr %s266, 4
        %s268 = scalar_lea.vmem %s2, %s267
        %s269 = smul.u32 8, %s20
      $region36: #{conv2d_s2_p1.1} parent=23 // pred_fallthru
        _
    $region24: #{conv2d_s2_p1.1} parent=5 // pred_fallthru
      _
    %p270 = scmp.le.s32.totalorder 1, %s11
    %p271 = scmp.lt.s32.totalorder %s11, 3
    %p272 = pnand %p270, %p271
    %p273 = pneg %p272
    // Predicated region
    $region37: #{conv2d_s2_p1.1} parent=5 // pred_check
      _
    $region38: #{conv2d_s2_p1.1} parent=5 // pred_check_branch
      %275 = sbr.rel (%p272) target = $region40
    $region39: #{conv2d_s2_p1.1} parent=5 // pred_region
      %s276 = ssub.s32 %s11, 1
      %s277 = smul.u32 8, %s23
      %p278 = scmp.lt.s32.totalorder %s22, 1
      %s279 = scalar_select %p278, %s22, 1
      %p280 = scmp.lt.s32.totalorder %s277, 7
      %s281 = scalar_select %p280, %s277, 7
      %s282 = smul.addr %s281, 2
      %s283 = smul.addr %s279, 16
      %s284 = sadd.s32 %s282, %s283
      %s285 = smul.addr %s284, 4
      %s286 = scalar_lea.vmem %s0, %s285
      %p287 = pneg %p58
      %p288 = pneg %p55
      %s289 = smul.u32 8, %s23
      %p290 = scmp.lt.s32.totalorder %s22, 1
      %s291 = scalar_select %p290, %s22, 1
      %p292 = scmp.lt.s32.totalorder %s289, 7
      %s293 = scalar_select %p292, %s289, 7
      %s294 = smul.addr %s293, 2
      %s295 = smul.addr %s291, 16
      %s296 = sadd.s32 %s294, %s295
      %s297 = smul.addr %s296, 4
      %s298 = scalar_lea.vmem %s1, %s297
      %p299 = pneg %p86
      %p300 = pneg %p83
      %s301 = smul.u32 8, %s23
      %p302 = scmp.lt.s32.totalorder %s22, 1
      %s303 = scalar_select %p302, %s22, 1
      %p304 = scmp.lt.s32.totalorder %s301, 7
      %s305 = scalar_select %p304, %s301, 7
      %s306 = smul.addr %s305, 2
      %s307 = smul.addr %s303, 16
      %s308 = sadd.s32 %s306, %s307
      %s309 = smul.addr %s308, 4
      %s310 = scalar_lea.vmem %s2, %s309
      %p311 = pneg %p114
      %p312 = pneg %p111
      %p313 = scmp.lt.s32.totalorder %s21, 0
      %s314 = scalar_select %p313, %s21, 0
      %s315 = smul.addr %s314, 4
      %s316 = scalar_lea.vmem %s3, %s315
      %p317 = pneg %p140
      %p318 = pneg %p137
      %p319 = scmp.lt.s32.totalorder %s21, 0
      %s320 = scalar_select %p319, %s21, 0
      %s321 = scalar_lea.vmem %s4, %s320
      %p322 = pneg %p166
      %p323 = pneg %p163
      %p324 = pneg %p196
      %p325 = pneg %p193
      %s326 = smul.u32 8, %s23
      %p327 = scmp.lt.s32.totalorder %s22, 1
      %s328 = scalar_select %p327, %s22, 1
      %p329 = scmp.lt.s32.totalorder %s326, 7
      %s330 = scalar_select %p329, %s326, 7
      %p331 = scmp.lt.s32.totalorder %s21, 0
      %s332 = scalar_select %p331, %s21, 0
      %s333 = sadd.s32 %s332, %s330
      %s334 = smul.addr %s328, 8
      %s335 = sadd.s32 %s333, %s334
      %s336 = smul.addr %s335, 8
      %s337 = scalar_lea.vmem %s5, %s336
      %s338 = smul.u32 8, %s23
      %p339 = scmp.lt.s32.totalorder %s22, 1
      %s340 = scalar_select %p339, %s22, 1
      %p341 = scmp.lt.s32.totalorder %s338, 7
      %s342 = scalar_select %p341, %s338, 7
      %s343 = smul.addr %s342, 2
      %s344 = smul.addr %s340, 16
      %s345 = sadd.s32 %s343, %s344
      %s346 = smul.addr %s345, 4
      %s347 = scalar_lea.vmem %s0, %s346
      %s348 = smul.u32 8, %s23
      %s349 = smul.u32 8, %s23
      %p350 = scmp.lt.s32.totalorder %s22, 1
      %s351 = scalar_select %p350, %s22, 1
      %p352 = scmp.lt.s32.totalorder %s349, 7
      %s353 = scalar_select %p352, %s349, 7
      %s354 = smul.addr %s353, 2
      %s355 = smul.addr %s351, 16
      %s356 = sadd.s32 %s354, %s355
      %s357 = smul.addr %s356, 4
      %s358 = scalar_lea.vmem %s1, %s357
      %s359 = smul.u32 8, %s23
      %s360 = smul.u32 8, %s23
      %p361 = scmp.lt.s32.totalorder %s22, 1
      %s362 = scalar_select %p361, %s22, 1
      %p363 = scmp.lt.s32.totalorder %s360, 7
      %s364 = scalar_select %p363, %s360, 7
      %s365 = smul.addr %s364, 2
      %s366 = smul.addr %s362, 16
      %s367 = sadd.s32 %s365, %s366
      %s368 = smul.addr %s367, 4
      %s369 = scalar_lea.vmem %s2, %s368
      %s370 = smul.u32 8, %s23
      %p371 = scmp.lt.s32.totalorder %s21, 0
      %s372 = scalar_select %p371, %s21, 0
      %s373 = smul.addr %s372, 4
      %s374 = scalar_lea.vmem %s3, %s373
      %p375 = scmp.lt.s32.totalorder %s21, 0
      %s376 = scalar_select %p375, %s21, 0
      %s377 = scalar_lea.vmem %s4, %s376
      %s378 = smul.u32 8, %s23
      %p379 = scmp.lt.s32.totalorder %s22, 1
      %s380 = scalar_select %p379, %s22, 1
      %p381 = scmp.lt.s32.totalorder %s378, 7
      %s382 = scalar_select %p381, %s378, 7
      %p383 = scmp.lt.s32.totalorder %s21, 0
      %s384 = scalar_select %p383, %s21, 0
      %s385 = sadd.s32 %s384, %s382
      %s386 = smul.addr %s380, 8
      %s387 = sadd.s32 %s385, %s386
      %s388 = smul.addr %s387, 8
      %s389 = scalar_lea.vmem %s5, %s388
      %s390 = smul.u32 8, %s23
      %v392 = vld [vmem:[%s347] sm:$0xf]
      %v393 = vld [vmem:[%s347 + $0x8] sm:$0xf]
      %v394 = vld [vmem:[%s347 + $0x10] sm:$0xf]
      %v395 = vld [vmem:[%s347 + $0x18] sm:$0xf]
      %v396 = vld [vmem:[%s347 + $0x20] sm:$0xf]
      %v397 = vld [vmem:[%s347 + $0x28] sm:$0xf]
      %v398 = vld [vmem:[%s347 + $0x30] sm:$0xf]
      %v399 = vld [vmem:[%s347 + $0x38] sm:$0xf]
      %v400 = vld [vmem:[%s374] sm:$0x3]
      %v401 = vld [vmem:[%s374] sm:$0xc]
      %v410 = vunpack.c.l.b16 %v392
      %v411 = vunpack.c.l.b16 %v393
      %v412 = vunpack.c.l.b16 %v394
      %v413 = vunpack.c.l.b16 %v395
      %v414 = vunpack.c.l.b16 %v396
      %v415 = vunpack.c.l.b16 %v397
      %v416 = vunpack.c.l.b16 %v398
      %v417 = vunpack.c.l.b16 %v399
      %v418 = vpack.c.b16 %v411, %v410
      %v419 = vpack.c.b16 %v413, %v412
      %v420 = vpack.c.b16 %v415, %v414
      %v421 = vpack.c.b16 %v417, %v416
      %422 = vrot.lane.b32.xlu0 %v418, 124
      %v423 = vpop.permute.xlu0 %422
      %424 = vrot.lane.b32.xlu0 %v419, 124
      %v425 = vpop.permute.xlu0 %424
      %426 = vrot.lane.b32.xlu0 %v420, 124
      %v427 = vpop.permute.xlu0 %426
      %428 = vrot.lane.b32.xlu0 %v421, 124
      %v429 = vpop.permute.xlu0 %428
      %v431 = vunpack.c.l.b16 %v401
      %v432 = vpack.c.b16 %v431, %v431
      %v433 = vrot.slane %v432, 2
      %vm434 = vcmask 31744
      %v436 = vsel %vm434, %v423, 0
      %v439 = vsel %vm434, %v425, 0
      %v442 = vsel %vm434, %v427, 0
      %v445 = vsel %vm434, %v429, 0
      %vm447 = vcmask 1041408
      %v449 = vsel %vm447, %v433, 0
      %451 = vmatprep.subr.bf16.mxu0 0
      %452 = vmatpush1.bf16.msra.mxu0 %v449
      %453 = vmatprep.subr.bf16.mxu0 0
      %454 = vmatpush1.bf16.msra.mxu0 0
      %455 = vmatprep.subr.bf16.mxu0 0
      %456 = vmatpush1.bf16.msra.mxu0 0
      %457 = vmatprep.subr.bf16.mxu0 0
      %458 = vmatpush1.bf16.msra.mxu0 0
      %459 = vmatprep.subr.bf16.mxu0 0
      %460 = vmatpush1.bf16.msra.mxu0 0
      %461 = vmatprep.subr.bf16.mxu0 0
      %462 = vmatpush1.bf16.msra.mxu0 0
      %463 = vmatprep.subr.bf16.mxu0 0
      %464 = vmatpush1.bf16.msra.mxu0 0
      %465 = vmatprep.subr.bf16.mxu0 0
      %466 = vmatpush1.bf16.msra.mxu0 0
      %467 = vmatprep.subr.bf16.mxu0 0
      %468 = vmatpush1.bf16.msra.mxu0 0
      %469 = vmatprep.subr.bf16.mxu0 0
      %470 = vmatpush1.bf16.msra.mxu0 0
      %471 = vmatprep.subr.bf16.mxu0 0
      %472 = vmatpush1.bf16.msra.mxu0 0
      %473 = vmatprep.subr.bf16.mxu0 0
      %474 = vmatpush1.bf16.msra.mxu0 0
      %475 = vmatprep.subr.bf16.mxu0 0
      %476 = vmatpush1.bf16.msra.mxu0 0
      %477 = vmatprep.subr.bf16.mxu0 0
      %478 = vmatpush1.bf16.msra.mxu0 0
      %479 = vmatprep.subr.bf16.mxu0 0
      %480 = vmatpush1.bf16.msra.mxu0 0
      %481 = vmatprep.subr.bf16.mxu0 0
      %482 = vmatpush1.bf16.msra.mxu0 0
      %483 = vmatprep.mubr.bf16.mxu0 0
      %484 = vmatmul.mubr.bf16.gmra.mrb[0].mxu0 %v436
      %v485 = vpop.f32.mrb[0].mxu0
      %v486 = vadd.f32 0.0, %v485
      %v487 = vpop.f32.mrb[0].mxu0
      %v488 = vpop.f32.mrb[0].mxu0
      %v489 = vadd.f32 0.0, %v488
      %v490 = vpop.f32.mrb[0].mxu0
      %491 = vmatprep.mubr.bf16.mxu0 0
      %492 = vmatmul.mubr.bf16.gmra.mrb[0].mxu0 %v439
      %v493 = vpop.f32.mrb[0].mxu0
      %v494 = vadd.f32 0.0, %v493
      %v495 = vpop.f32.mrb[0].mxu0
      %v496 = vpop.f32.mrb[0].mxu0
      %v497 = vadd.f32 0.0, %v496
      %v498 = vpop.f32.mrb[0].mxu0
      %499 = vmatprep.mubr.bf16.mxu0 0
      %500 = vmatmul.mubr.bf16.gmra.mrb[0].mxu0 %v442
      %v501 = vpop.f32.mrb[0].mxu0
      %v502 = vadd.f32 0.0, %v501
      %v503 = vpop.f32.mrb[0].mxu0
      %v504 = vpop.f32.mrb[0].mxu0
      %v505 = vadd.f32 0.0, %v504
      %v506 = vpop.f32.mrb[0].mxu0
      %507 = vmatprep.mubr.bf16.mxu0 0
      %508 = vmatmul.mubr.bf16.gmra.mrb[0].mxu0 %v445
      %v509 = vpop.f32.mrb[0].mxu0
      %v510 = vadd.f32 0.0, %v509
      %v511 = vpop.f32.mrb[0].mxu0
      %v512 = vpop.f32.mrb[0].mxu0
      %v513 = vadd.f32 0.0, %v512
      %v514 = vpop.f32.mrb[0].mxu0
      %515 = vdwg.mxu0
      %v517 = vsel %vm434, %v418, 0
      %v520 = vsel %vm434, %v419, 0
      %v523 = vsel %vm434, %v420, 0
      %v526 = vsel %vm434, %v421, 0
      %v529 = vsel %vm447, %v400, 0
      %531 = vmatprep.subr.bf16.mxu0 0
      %532 = vmatpush1.bf16.msra.mxu0 %v529
      %533 = vmatprep.subr.bf16.mxu0 0
      %534 = vmatpush1.bf16.msra.mxu0 0
      %535 = vmatprep.subr.bf16.mxu0 0
      %536 = vmatpush1.bf16.msra.mxu0 0
      %537 = vmatprep.subr.bf16.mxu0 0
      %538 = vmatpush1.bf16.msra.mxu0 0
      %539 = vmatprep.subr.bf16.mxu0 0
      %540 = vmatpush1.bf16.msra.mxu0 0
      %541 = vmatprep.subr.bf16.mxu0 0
      %542 = vmatpush1.bf16.msra.mxu0 0
      %543 = vmatprep.subr.bf16.mxu0 0
      %544 = vmatpush1.bf16.msra.mxu0 0
      %545 = vmatprep.subr.bf16.mxu0 0
      %546 = vmatpush1.bf16.msra.mxu0 0
      %547 = vmatprep.subr.bf16.mxu0 0
      %548 = vmatpush1.bf16.msra.mxu0 0
      %549 = vmatprep.subr.bf16.mxu0 0
      %550 = vmatpush1.bf16.msra.mxu0 0
      %551 = vmatprep.subr.bf16.mxu0 0
      %552 = vmatpush1.bf16.msra.mxu0 0
      %553 = vmatprep.subr.bf16.mxu0 0
      %554 = vmatpush1.bf16.msra.mxu0 0
      %555 = vmatprep.subr.bf16.mxu0 0
      %556 = vmatpush1.bf16.msra.mxu0 0
      %557 = vmatprep.subr.bf16.mxu0 0
      %558 = vmatpush1.bf16.msra.mxu0 0
      %559 = vmatprep.subr.bf16.mxu0 0
      %560 = vmatpush1.bf16.msra.mxu0 0
      %561 = vmatprep.subr.bf16.mxu0 0
      %562 = vmatpush1.bf16.msra.mxu0 0
      %563 = vmatprep.mubr.bf16.mxu0 0
      %564 = vmatmul.mubr.bf16.gmra.mrb[0].mxu0 %v517
      %v565 = vpop.f32.mrb[0].mxu0
      %v566 = vadd.f32 %v486, %v565
      %v567 = vpop.f32.mrb[0].mxu0
      %v568 = vpop.f32.mrb[0].mxu0
      %v569 = vadd.f32 %v489, %v568
      %v570 = vpop.f32.mrb[0].mxu0
      %571 = vmatprep.mubr.bf16.mxu0 0
      %572 = vmatmul.mubr.bf16.gmra.mrb[0].mxu0 %v520
      %v573 = vpop.f32.mrb[0].mxu0
      %v574 = vadd.f32 %v494, %v573
      %v575 = vpop.f32.mrb[0].mxu0
      %v576 = vpop.f32.mrb[0].mxu0
      %v577 = vadd.f32 %v497, %v576
      %v578 = vpop.f32.mrb[0].mxu0
      %579 = vmatprep.mubr.bf16.mxu0 0
      %580 = vmatmul.mubr.bf16.gmra.mrb[0].mxu0 %v523
      %v581 = vpop.f32.mrb[0].mxu0
      %v582 = vadd.f32 %v502, %v581
      %v583 = vpop.f32.mrb[0].mxu0
      %v584 = vpop.f32.mrb[0].mxu0
      %v585 = vadd.f32 %v505, %v584
      %v586 = vpop.f32.mrb[0].mxu0
      %587 = vmatprep.mubr.bf16.mxu0 0
      %588 = vmatmul.mubr.bf16.gmra.mrb[0].mxu0 %v526
      %v589 = vpop.f32.mrb[0].mxu0
      %v590 = vadd.f32 %v510, %v589
      %v591 = vpop.f32.mrb[0].mxu0
      %v592 = vpop.f32.mrb[0].mxu0
      %v593 = vadd.f32 %v513, %v592
      %v594 = vpop.f32.mrb[0].mxu0
      %595 = vdwg.mxu0
      %v596 = vld [vmem:[%s347] sm:$0xf]
      %v597 = vld [vmem:[%s347 + $0x4] sm:$0x1]
      %v598 = vld [vmem:[%s347 + $0x8] sm:$0xf]
      %v599 = vld [vmem:[%s347 + $0xc] sm:$0x1]
      %v600 = vld [vmem:[%s347 + $0x10] sm:$0xf]
      %v601 = vld [vmem:[%s347 + $0x14] sm:$0x1]
      %v602 = vld [vmem:[%s347 + $0x18] sm:$0xf]
      %v603 = vld [vmem:[%s347 + $0x1c] sm:$0x1]
      %v604 = vld [vmem:[%s347 + $0x20] sm:$0xf]
      %v605 = vld [vmem:[%s347 + $0x24] sm:$0x1]
      %v606 = vld [vmem:[%s347 + $0x28] sm:$0xf]
      %v607 = vld [vmem:[%s347 + $0x2c] sm:$0x1]
      %v608 = vld [vmem:[%s347 + $0x30] sm:$0xf]
      %v609 = vld [vmem:[%s347 + $0x34] sm:$0x1]
      %v610 = vld [vmem:[%s347 + $0x38] sm:$0xf]
      %v611 = vld [vmem:[%s347 + $0x3c] sm:$0x1]
      %vm612 = vsmask.f32 3328
      %vm613 = vsmask.f32 7440
      %vm614 = vmor %vm612, %vm613
      %v616 = vshrl.u32 %v596, 16
      %v618 = vrot.slane %v616, 4
      %v619 = vshll.u32 %v596, 16
      %v621 = vrot.slane %v619, 5
      %v622 = vor.u32 %v618, %v621
      %v623 = vrot.slane %v622, 4
      %v625 = vshll.u32 %v597, 16
      %v627 = vrot.slane %v625, 5
      %v628 = vsel %vm614, %v623, %v627
      %v630 = vshrl.u32 %v598, 16
      %v632 = vrot.slane %v630, 4
      %v633 = vshll.u32 %v598, 16
      %v635 = vrot.slane %v633, 5
      %v636 = vor.u32 %v632, %v635
      %v637 = vrot.slane %v636, 4
      %v639 = vshll.u32 %v599, 16
      %v641 = vrot.slane %v639, 5
      %v642 = vsel %vm614, %v637, %v641
      %v644 = vshrl.u32 %v600, 16
      %v646 = vrot.slane %v644, 4
      %v647 = vshll.u32 %v600, 16
      %v649 = vrot.slane %v647, 5
      %v650 = vor.u32 %v646, %v649
      %v651 = vrot.slane %v650, 4
      %v653 = vshll.u32 %v601, 16
      %v655 = vrot.slane %v653, 5
      %v656 = vsel %vm614, %v651, %v655
      %v658 = vshrl.u32 %v602, 16
      %v660 = vrot.slane %v658, 4
      %v661 = vshll.u32 %v602, 16
      %v663 = vrot.slane %v661, 5
      %v664 = vor.u32 %v660, %v663
      %v665 = vrot.slane %v664, 4
      %v667 = vshll.u32 %v603, 16
      %v669 = vrot.slane %v667, 5
      %v670 = vsel %vm614, %v665, %v669
      %v672 = vshrl.u32 %v604, 16
      %v674 = vrot.slane %v672, 4
      %v675 = vshll.u32 %v604, 16
      %v677 = vrot.slane %v675, 5
      %v678 = vor.u32 %v674, %v677
      %v679 = vrot.slane %v678, 4
      %v681 = vshll.u32 %v605, 16
      %v683 = vrot.slane %v681, 5
      %v684 = vsel %vm614, %v679, %v683
      %v686 = vshrl.u32 %v606, 16
      %v688 = vrot.slane %v686, 4
      %v689 = vshll.u32 %v606, 16
      %v691 = vrot.slane %v689, 5
      %v692 = vor.u32 %v688, %v691
      %v693 = vrot.slane %v692, 4
      %v695 = vshll.u32 %v607, 16
      %v697 = vrot.slane %v695, 5
      %v698 = vsel %vm614, %v693, %v697
      %v700 = vshrl.u32 %v608, 16
      %v702 = vrot.slane %v700, 4
      %v703 = vshll.u32 %v608, 16
      %v705 = vrot.slane %v703, 5
      %v706 = vor.u32 %v702, %v705
      %v707 = vrot.slane %v706, 4
      %v709 = vshll.u32 %v609, 16
      %v711 = vrot.slane %v709, 5
      %v712 = vsel %vm614, %v707, %v711
      %v714 = vshrl.u32 %v610, 16
      %v716 = vrot.slane %v714, 4
      %v717 = vshll.u32 %v610, 16
      %v719 = vrot.slane %v717, 5
      %v720 = vor.u32 %v716, %v719
      %v721 = vrot.slane %v720, 4
      %v723 = vshll.u32 %v611, 16
      %v725 = vrot.slane %v723, 5
      %v726 = vsel %vm614, %v721, %v725
      %v727 = vld [vmem:[%s374 + $0x4] sm:$0x3]
      %v728 = vunpack.c.l.b16 %v628
      %v729 = vunpack.c.l.b16 %v642
      %v730 = vunpack.c.l.b16 %v656
      %v731 = vunpack.c.l.b16 %v670
      %v732 = vunpack.c.l.b16 %v684
      %v733 = vunpack.c.l.b16 %v698
      %v734 = vunpack.c.l.b16 %v712
      %v735 = vunpack.c.l.b16 %v726
      %v736 = vpack.c.b16 %v729, %v728
      %v737 = vpack.c.b16 %v731, %v730
      %v738 = vpack.c.b16 %v733, %v732
      %v739 = vpack.c.b16 %v735, %v734
      %v741 = vsel %vm434, %v736, 0
      %v744 = vsel %vm434, %v737, 0
      %v747 = vsel %vm434, %v738, 0
      %v750 = vsel %vm434, %v739, 0
      %v753 = vsel %vm447, %v727, 0
      %755 = vmatprep.subr.bf16.mxu0 0
      %756 = vmatpush1.bf16.msra.mxu0 %v753
      %757 = vmatprep.subr.bf16.mxu0 0
      %758 = vmatpush1.bf16.msra.mxu0 0
      %759 = vmatprep.subr.bf16.mxu0 0
      %760 = vmatpush1.bf16.msra.mxu0 0
      %761 = vmatprep.subr.bf16.mxu0 0
      %762 = vmatpush1.bf16.msra.mxu0 0
      %763 = vmatprep.subr.bf16.mxu0 0
      %764 = vmatpush1.bf16.msra.mxu0 0
      %765 = vmatprep.subr.bf16.mxu0 0
      %766 = vmatpush1.bf16.msra.mxu0 0
      %767 = vmatprep.subr.bf16.mxu0 0
      %768 = vmatpush1.bf16.msra.mxu0 0
      %769 = vmatprep.subr.bf16.mxu0 0
      %770 = vmatpush1.bf16.msra.mxu0 0
      %771 = vmatprep.subr.bf16.mxu0 0
      %772 = vmatpush1.bf16.msra.mxu0 0
      %773 = vmatprep.subr.bf16.mxu0 0
      %774 = vmatpush1.bf16.msra.mxu0 0
      %775 = vmatprep.subr.bf16.mxu0 0
      %776 = vmatpush1.bf16.msra.mxu0 0
      %777 = vmatprep.subr.bf16.mxu0 0
      %778 = vmatpush1.bf16.msra.mxu0 0
      %779 = vmatprep.subr.bf16.mxu0 0
      %780 = vmatpush1.bf16.msra.mxu0 0
      %781 = vmatprep.subr.bf16.mxu0 0
      %782 = vmatpush1.bf16.msra.mxu0 0
      %783 = vmatprep.subr.bf16.mxu0 0
      %784 = vmatpush1.bf16.msra.mxu0 0
      %785 = vmatprep.subr.bf16.mxu0 0
      %786 = vmatpush1.bf16.msra.mxu0 0
      %787 = vmatprep.mubr.bf16.mxu0 0
      %788 = vmatmul.mubr.bf16.gmra.mrb[0].mxu0 %v741
      %v789 = vpop.f32.mrb[0].mxu0
      %v790 = vadd.f32 0.0, %v789
      %v791 = vpop.f32.mrb[0].mxu0
      %v792 = vpop.f32.mrb[0].mxu0
      %v793 = vadd.f32 0.0, %v792
      %v794 = vpop.f32.mrb[0].mxu0
      %795 = vmatprep.mubr.bf16.mxu0 0
      %796 = vmatmul.mubr.bf16.gmra.mrb[0].mxu0 %v744
      %v797 = vpop.f32.mrb[0].mxu0
      %v798 = vadd.f32 0.0, %v797
      %v799 = vpop.f32.mrb[0].mxu0
      %v800 = vpop.f32.mrb[0].mxu0
      %v801 = vadd.f32 0.0, %v800
      %v802 = vpop.f32.mrb[0].mxu0
      %803 = vmatprep.mubr.bf16.mxu0 0
      %804 = vmatmul.mubr.bf16.gmra.mrb[0].mxu0 %v747
      %v805 = vpop.f32.mrb[0].mxu0
      %v806 = vadd.f32 0.0, %v805
      %v807 = vpop.f32.mrb[0].mxu0
      %v808 = vpop.f32.mrb[0].mxu0
      %v809 = vadd.f32 0.0, %v808
      %v810 = vpop.f32.mrb[0].mxu0
      %811 = vmatprep.mubr.bf16.mxu0 0
      %812 = vmatmul.mubr.bf16.gmra.mrb[0].mxu0 %v750
      %v813 = vpop.f32.mrb[0].mxu0
      %v814 = vadd.f32 0.0, %v813
      %v815 = vpop.f32.mrb[0].mxu0
      %v816 = vpop.f32.mrb[0].mxu0
      %v817 = vadd.f32 0.0, %v816
      %v818 = vpop.f32.mrb[0].mxu0
      %819 = vdwg.mxu0
      %v820 = vadd.f32 %v566, %v790
      %v821 = vadd.f32 %v569, %v793
      %v822 = vadd.f32 %v574, %v798
      %v823 = vadd.f32 %v577, %v801
      %v824 = vadd.f32 %v582, %v806
      %v825 = vadd.f32 %v585, %v809
      %v826 = vadd.f32 %v590, %v814
      %v827 = vadd.f32 %v593, %v817
      %v828 = vld [vmem:[%s358] sm:$0xf]
      %v829 = vld [vmem:[%s358 + $0x8] sm:$0xf]
      %v830 = vld [vmem:[%s358 + $0x10] sm:$0xf]
      %v831 = vld [vmem:[%s358 + $0x18] sm:$0xf]
      %v832 = vld [vmem:[%s358 + $0x20] sm:$0xf]
      %v833 = vld [vmem:[%s358 + $0x28] sm:$0xf]
      %v834 = vld [vmem:[%s358 + $0x30] sm:$0xf]
      %v835 = vld [vmem:[%s358 + $0x38] sm:$0xf]
      %v836 = vld [vmem:[%s374 + $0x4] sm:$0xc]
      %v845 = vunpack.c.l.b16 %v828
      %v846 = vunpack.c.l.b16 %v829
      %v847 = vunpack.c.l.b16 %v830
      %v848 = vunpack.c.l.b16 %v831
      %v849 = vunpack.c.l.b16 %v832
      %v850 = vunpack.c.l.b16 %v833
      %v851 = vunpack.c.l.b16 %v834
      %v852 = vunpack.c.l.b16 %v835
      %v853 = vpack.c.b16 %v846, %v845
      %v854 = vpack.c.b16 %v848, %v847
      %v855 = vpack.c.b16 %v850, %v849
      %v856 = vpack.c.b16 %v852, %v851
      %v858 = vunpack.c.l.b16 %v836
      %v859 = vpack.c.b16 %v858, %v858
      %v860 = vrot.slane %v859, 2
      %v862 = vsel %vm434, %v853, 0
      %v865 = vsel %vm434, %v854, 0
      %v868 = vsel %vm434, %v855, 0
      %v871 = vsel %vm434, %v856, 0
      %v874 = vsel %vm447, %v860, 0
      %876 = vmatprep.subr.bf16.mxu0 0
      %877 = vmatpush1.bf16.msra.mxu0 %v874
      %878 = vmatprep.subr.bf16.mxu0 0
      %879 = vmatpush1.bf16.msra.mxu0 0
      %880 = vmatprep.subr.bf16.mxu0 0
      %881 = vmatpush1.bf16.msra.mxu0 0
      %882 = vmatprep.subr.bf16.mxu0 0
      %883 = vmatpush1.bf16.msra.mxu0 0
      %884 = vmatprep.subr.bf16.mxu0 0
      %885 = vmatpush1.bf16.msra.mxu0 0
      %886 = vmatprep.subr.bf16.mxu0 0
      %887 = vmatpush1.bf16.msra.mxu0 0
      %888 = vmatprep.subr.bf16.mxu0 0
      %889 = vmatpush1.bf16.msra.mxu0 0
      %890 = vmatprep.subr.bf16.mxu0 0
      %891 = vmatpush1.bf16.msra.mxu0 0
      %892 = vmatprep.subr.bf16.mxu0 0
      %893 = vmatpush1.bf16.msra.mxu0 0
      %894 = vmatprep.subr.bf16.mxu0 0
      %895 = vmatpush1.bf16.msra.mxu0 0
      %896 = vmatprep.subr.bf16.mxu0 0
      %897 = vmatpush1.bf16.msra.mxu0 0
      %898 = vmatprep.subr.bf16.mxu0 0
      %899 = vmatpush1.bf16.msra.mxu0 0
      %900 = vmatprep.subr.bf16.mxu0 0
      %901 = vmatpush1.bf16.msra.mxu0 0
      %902 = vmatprep.subr.bf16.mxu0 0
      %903 = vmatpush1.bf16.msra.mxu0 0
      %904 = vmatprep.subr.bf16.mxu0 0
      %905 = vmatpush1.bf16.msra.mxu0 0
      %906 = vmatprep.subr.bf16.mxu0 0
      %907 = vmatpush1.bf16.msra.mxu0 0
      %908 = vmatprep.mubr.bf16.mxu0 0
      %909 = vmatmul.mubr.bf16.gmra.mrb[0].mxu0 %v862
      %v910 = vpop.f32.mrb[0].mxu0
      %v911 = vadd.f32 0.0, %v910
      %v912 = vpop.f32.mrb[0].mxu0
      %v913 = vpop.f32.mrb[0].mxu0
      %v914 = vadd.f32 0.0, %v913
      %v915 = vpop.f32.mrb[0].mxu0
      %916 = vmatprep.mubr.bf16.mxu0 0
      %917 = vmatmul.mubr.bf16.gmra.mrb[0].mxu0 %v865
      %v918 = vpop.f32.mrb[0].mxu0
      %v919 = vadd.f32 0.0, %v918
      %v920 = vpop.f32.mrb[0].mxu0
      %v921 = vpop.f32.mrb[0].mxu0
      %v922 = vadd.f32 0.0, %v921
      %v923 = vpop.f32.mrb[0].mxu0
      %924 = vmatprep.mubr.bf16.mxu0 0
      %925 = vmatmul.mubr.bf16.gmra.mrb[0].mxu0 %v868
      %v926 = vpop.f32.mrb[0].mxu0
      %v927 = vadd.f32 0.0, %v926
      %v928 = vpop.f32.mrb[0].mxu0
      %v929 = vpop.f32.mrb[0].mxu0
      %v930 = vadd.f32 0.0, %v929
      %v931 = vpop.f32.mrb[0].mxu0
      %932 = vmatprep.mubr.bf16.mxu0 0
      %933 = vmatmul.mubr.bf16.gmra.mrb[0].mxu0 %v871
      %v934 = vpop.f32.mrb[0].mxu0
      %v935 = vadd.f32 0.0, %v934
      %v936 = vpop.f32.mrb[0].mxu0
      %v937 = vpop.f32.mrb[0].mxu0
      %v938 = vadd.f32 0.0, %v937
      %v939 = vpop.f32.mrb[0].mxu0
      %940 = vdwg.mxu0
      %v941 = vadd.f32 %v820, %v911
      %v942 = vadd.f32 %v821, %v914
      %v943 = vadd.f32 %v822, %v919
      %v944 = vadd.f32 %v823, %v922
      %v945 = vadd.f32 %v824, %v927
      %v946 = vadd.f32 %v825, %v930
      %v947 = vadd.f32 %v826, %v935
      %v948 = vadd.f32 %v827, %v938
      %v949 = vld [vmem:[%s374 + $0x8] sm:$0x3]
      %950 = vrot.lane.b32.xlu0 %v853, 124
      %v951 = vpop.permute.xlu0 %950
      %952 = vrot.lane.b32.xlu0 %v854, 124
      %v953 = vpop.permute.xlu0 %952
      %954 = vrot.lane.b32.xlu0 %v855, 124
      %v955 = vpop.permute.xlu0 %954
      %956 = vrot.lane.b32.xlu0 %v856, 124
      %v957 = vpop.permute.xlu0 %956
      %v959 = vsel %vm434, %v951, 0
      %v962 = vsel %vm434, %v953, 0
      %v965 = vsel %vm434, %v955, 0
      %v968 = vsel %vm434, %v957, 0
      %v971 = vsel %vm447, %v949, 0
      %973 = vmatprep.subr.bf16.mxu0 0
      %974 = vmatpush1.bf16.msra.mxu0 %v971
      %975 = vmatprep.subr.bf16.mxu0 0
      %976 = vmatpush1.bf16.msra.mxu0 0
      %977 = vmatprep.subr.bf16.mxu0 0
      %978 = vmatpush1.bf16.msra.mxu0 0
      %979 = vmatprep.subr.bf16.mxu0 0
      %980 = vmatpush1.bf16.msra.mxu0 0
      %981 = vmatprep.subr.bf16.mxu0 0
      %982 = vmatpush1.bf16.msra.mxu0 0
      %983 = vmatprep.subr.bf16.mxu0 0
      %984 = vmatpush1.bf16.msra.mxu0 0
      %985 = vmatprep.subr.bf16.mxu0 0
      %986 = vmatpush1.bf16.msra.mxu0 0
      %987 = vmatprep.subr.bf16.mxu0 0
      %988 = vmatpush1.bf16.msra.mxu0 0
      %989 = vmatprep.subr.bf16.mxu0 0
      %990 = vmatpush1.bf16.msra.mxu0 0
      %991 = vmatprep.subr.bf16.mxu0 0
      %992 = vmatpush1.bf16.msra.mxu0 0
      %993 = vmatprep.subr.bf16.mxu0 0
      %994 = vmatpush1.bf16.msra.mxu0 0
      %995 = vmatprep.subr.bf16.mxu0 0
      %996 = vmatpush1.bf16.msra.mxu0 0
      %997 = vmatprep.subr.bf16.mxu0 0
      %998 = vmatpush1.bf16.msra.mxu0 0
      %999 = vmatprep.subr.bf16.mxu0 0
      %1000 = vmatpush1.bf16.msra.mxu0 0
      %1001 = vmatprep.subr.bf16.mxu0 0
      %1002 = vmatpush1.bf16.msra.mxu0 0
      %1003 = vmatprep.subr.bf16.mxu0 0
      %1004 = vmatpush1.bf16.msra.mxu0 0
      %1005 = vmatprep.mubr.bf16.mxu0 0
      %1006 = vmatmul.mubr.bf16.gmra.mrb[0].mxu0 %v959
      %v1007 = vpop.f32.mrb[0].mxu0
      %v1008 = vadd.f32 0.0, %v1007
      %v1009 = vpop.f32.mrb[0].mxu0
      %v1010 = vpop.f32.mrb[0].mxu0
      %v1011 = vadd.f32 0.0, %v1010
      %v1012 = vpop.f32.mrb[0].mxu0
      %1013 = vmatprep.mubr.bf16.mxu0 0
      %1014 = vmatmul.mubr.bf16.gmra.mrb[0].mxu0 %v962
      %v1015 = vpop.f32.mrb[0].mxu0
      %v1016 = vadd.f32 0.0, %v1015
      %v1017 = vpop.f32.mrb[0].mxu0
      %v1018 = vpop.f32.mrb[0].mxu0
      %v1019 = vadd.f32 0.0, %v1018
      %v1020 = vpop.f32.mrb[0].mxu0
      %1021 = vmatprep.mubr.bf16.mxu0 0
      %1022 = vmatmul.mubr.bf16.gmra.mrb[0].mxu0 %v965
      %v1023 = vpop.f32.mrb[0].mxu0
      %v1024 = vadd.f32 0.0, %v1023
      %v1025 = vpop.f32.mrb[0].mxu0
      %v1026 = vpop.f32.mrb[0].mxu0
      %v1027 = vadd.f32 0.0, %v1026
      %v1028 = vpop.f32.mrb[0].mxu0
      %1029 = vmatprep.mubr.bf16.mxu0 0
      %1030 = vmatmul.mubr.bf16.gmra.mrb[0].mxu0 %v968
      %v1031 = vpop.f32.mrb[0].mxu0
      %v1032 = vadd.f32 0.0, %v1031
      %v1033 = vpop.f32.mrb[0].mxu0
      %v1034 = vpop.f32.mrb[0].mxu0
      %v1035 = vadd.f32 0.0, %v1034
      %v1036 = vpop.f32.mrb[0].mxu0
      %1037 = vdwg.mxu0
      %v1038 = vadd.f32 %v941, %v1008
      %v1039 = vadd.f32 %v942, %v1011
      %v1040 = vadd.f32 %v943, %v1016
      %v1041 = vadd.f32 %v944, %v1019
      %v1042 = vadd.f32 %v945, %v1024
      %v1043 = vadd.f32 %v946, %v1027
      %v1044 = vadd.f32 %v947, %v1032
      %v1045 = vadd.f32 %v948, %v1035
      %v1046 = vld [vmem:[%s358] sm:$0xf]
      %v1047 = vld [vmem:[%s358 + $0x4] sm:$0x1]
      %v1048 = vld [vmem:[%s358 + $0x8] sm:$0xf]
      %v1049 = vld [vmem:[%s358 + $0xc] sm:$0x1]
      %v1050 = vld [vmem:[%s358 + $0x10] sm:$0xf]
      %v1051 = vld [vmem:[%s358 + $0x14] sm:$0x1]
      %v1052 = vld [vmem:[%s358 + $0x18] sm:$0xf]
      %v1053 = vld [vmem:[%s358 + $0x1c] sm:$0x1]
      %v1054 = vld [vmem:[%s358 + $0x20] sm:$0xf]
      %v1055 = vld [vmem:[%s358 + $0x24] sm:$0x1]
      %v1056 = vld [vmem:[%s358 + $0x28] sm:$0xf]
      %v1057 = vld [vmem:[%s358 + $0x2c] sm:$0x1]
      %v1058 = vld [vmem:[%s358 + $0x30] sm:$0xf]
      %v1059 = vld [vmem:[%s358 + $0x34] sm:$0x1]
      %v1060 = vld [vmem:[%s358 + $0x38] sm:$0xf]
      %v1061 = vld [vmem:[%s358 + $0x3c] sm:$0x1]
      %v1063 = vshrl.u32 %v1046, 16
      %v1065 = vrot.slane %v1063, 4
      %v1066 = vshll.u32 %v1046, 16
      %v1068 = vrot.slane %v1066, 5
      %v1069 = vor.u32 %v1065, %v1068
      %v1070 = vrot.slane %v1069, 4
      %v1072 = vshll.u32 %v1047, 16
      %v1074 = vrot.slane %v1072, 5
      %v1075 = vsel %vm614, %v1070, %v1074
      %v1077 = vshrl.u32 %v1048, 16
      %v1079 = vrot.slane %v1077, 4
      %v1080 = vshll.u32 %v1048, 16
      %v1082 = vrot.slane %v1080, 5
      %v1083 = vor.u32 %v1079, %v1082
      %v1084 = vrot.slane %v1083, 4
      %v1086 = vshll.u32 %v1049, 16
      %v1088 = vrot.slane %v1086, 5
      %v1089 = vsel %vm614, %v1084, %v1088
      %v1091 = vshrl.u32 %v1050, 16
      %v1093 = vrot.slane %v1091, 4
      %v1094 = vshll.u32 %v1050, 16
      %v1096 = vrot.slane %v1094, 5
      %v1097 = vor.u32 %v1093, %v1096
      %v1098 = vrot.slane %v1097, 4
      %v1100 = vshll.u32 %v1051, 16
      %v1102 = vrot.slane %v1100, 5
      %v1103 = vsel %vm614, %v1098, %v1102
      %v1105 = vshrl.u32 %v1052, 16
      %v1107 = vrot.slane %v1105, 4
      %v1108 = vshll.u32 %v1052, 16
      %v1110 = vrot.slane %v1108, 5
      %v1111 = vor.u32 %v1107, %v1110
      %v1112 = vrot.slane %v1111, 4
      %v1114 = vshll.u32 %v1053, 16
      %v1116 = vrot.slane %v1114, 5
      %v1117 = vsel %vm614, %v1112, %v1116
      %v1119 = vshrl.u32 %v1054, 16
      %v1121 = vrot.slane %v1119, 4
      %v1122 = vshll.u32 %v1054, 16
      %v1124 = vrot.slane %v1122, 5
      %v1125 = vor.u32 %v1121, %v1124
      %v1126 = vrot.slane %v1125, 4
      %v1128 = vshll.u32 %v1055, 16
      %v1130 = vrot.slane %v1128, 5
      %v1131 = vsel %vm614, %v1126, %v1130
      %v1133 = vshrl.u32 %v1056, 16
      %v1135 = vrot.slane %v1133, 4
      %v1136 = vshll.u32 %v1056, 16
      %v1138 = vrot.slane %v1136, 5
      %v1139 = vor.u32 %v1135, %v1138
      %v1140 = vrot.slane %v1139, 4
      %v1142 = vshll.u32 %v1057, 16
      %v1144 = vrot.slane %v1142, 5
      %v1145 = vsel %vm614, %v1140, %v1144
      %v1147 = vshrl.u32 %v1058, 16
      %v1149 = vrot.slane %v1147, 4
      %v1150 = vshll.u32 %v1058, 16
      %v1152 = vrot.slane %v1150, 5
      %v1153 = vor.u32 %v1149, %v1152
      %v1154 = vrot.slane %v1153, 4
      %v1156 = vshll.u32 %v1059, 16
      %v1158 = vrot.slane %v1156, 5
      %v1159 = vsel %vm614, %v1154, %v1158
      %v1161 = vshrl.u32 %v1060, 16
      %v1163 = vrot.slane %v1161, 4
      %v1164 = vshll.u32 %v1060, 16
      %v1166 = vrot.slane %v1164, 5
      %v1167 = vor.u32 %v1163, %v1166
      %v1168 = vrot.slane %v1167, 4
      %v1170 = vshll.u32 %v1061, 16
      %v1172 = vrot.slane %v1170, 5
      %v1173 = vsel %vm614, %v1168, %v1172
      %v1174 = vld [vmem:[%s374 + $0x8] sm:$0xc]
      %v1175 = vunpack.c.l.b16 %v1075
      %v1176 = vunpack.c.l.b16 %v1089
      %v1177 = vunpack.c.l.b16 %v1103
      %v1178 = vunpack.c.l.b16 %v1117
      %v1179 = vunpack.c.l.b16 %v1131
      %v1180 = vunpack.c.l.b16 %v1145
      %v1181 = vunpack.c.l.b16 %v1159
      %v1182 = vunpack.c.l.b16 %v1173
      %v1183 = vpack.c.b16 %v1176, %v1175
      %v1184 = vpack.c.b16 %v1178, %v1177
      %v1185 = vpack.c.b16 %v1180, %v1179
      %v1186 = vpack.c.b16 %v1182, %v1181
      %v1188 = vunpack.c.l.b16 %v1174
      %v1189 = vpack.c.b16 %v1188, %v1188
      %v1190 = vrot.slane %v1189, 2
      %v1192 = vsel %vm434, %v1183, 0
      %v1195 = vsel %vm434, %v1184, 0
      %v1198 = vsel %vm434, %v1185, 0
      %v1201 = vsel %vm434, %v1186, 0
      %v1204 = vsel %vm447, %v1190, 0
      %1206 = vmatprep.subr.bf16.mxu0 0
      %1207 = vmatpush1.bf16.msra.mxu0 %v1204
      %1208 = vmatprep.subr.bf16.mxu0 0
      %1209 = vmatpush1.bf16.msra.mxu0 0
      %1210 = vmatprep.subr.bf16.mxu0 0
      %1211 = vmatpush1.bf16.msra.mxu0 0
      %1212 = vmatprep.subr.bf16.mxu0 0
      %1213 = vmatpush1.bf16.msra.mxu0 0
      %1214 = vmatprep.subr.bf16.mxu0 0
      %1215 = vmatpush1.bf16.msra.mxu0 0
      %1216 = vmatprep.subr.bf16.mxu0 0
      %1217 = vmatpush1.bf16.msra.mxu0 0
      %1218 = vmatprep.subr.bf16.mxu0 0
      %1219 = vmatpush1.bf16.msra.mxu0 0
      %1220 = vmatprep.subr.bf16.mxu0 0
      %1221 = vmatpush1.bf16.msra.mxu0 0
      %1222 = vmatprep.subr.bf16.mxu0 0
      %1223 = vmatpush1.bf16.msra.mxu0 0
      %1224 = vmatprep.subr.bf16.mxu0 0
      %1225 = vmatpush1.bf16.msra.mxu0 0
      %1226 = vmatprep.subr.bf16.mxu0 0
      %1227 = vmatpush1.bf16.msra.mxu0 0
      %1228 = vmatprep.subr.bf16.mxu0 0
      %1229 = vmatpush1.bf16.msra.mxu0 0
      %1230 = vmatprep.subr.bf16.mxu0 0
      %1231 = vmatpush1.bf16.msra.mxu0 0
      %1232 = vmatprep.subr.bf16.mxu0 0
      %1233 = vmatpush1.bf16.msra.mxu0 0
      %1234 = vmatprep.subr.bf16.mxu0 0
      %1235 = vmatpush1.bf16.msra.mxu0 0
      %1236 = vmatprep.subr.bf16.mxu0 0
      %1237 = vmatpush1.bf16.msra.mxu0 0
      %1238 = vmatprep.mubr.bf16.mxu0 0
      %1239 = vmatmul.mubr.bf16.gmra.mrb[0].mxu0 %v1192
      %v1240 = vpop.f32.mrb[0].mxu0
      %v1241 = vadd.f32 0.0, %v1240
      %v1242 = vpop.f32.mrb[0].mxu0
      %v1243 = vpop.f32.mrb[0].mxu0
      %v1244 = vadd.f32 0.0, %v1243
      %v1245 = vpop.f32.mrb[0].mxu0
      %1246 = vmatprep.mubr.bf16.mxu0 0
      %1247 = vmatmul.mubr.bf16.gmra.mrb[0].mxu0 %v1195
      %v1248 = vpop.f32.mrb[0].mxu0
      %v1249 = vadd.f32 0.0, %v1248
      %v1250 = vpop.f32.mrb[0].mxu0
      %v1251 = vpop.f32.mrb[0].mxu0
      %v1252 = vadd.f32 0.0, %v1251
      %v1253 = vpop.f32.mrb[0].mxu0
      %1254 = vmatprep.mubr.bf16.mxu0 0
      %1255 = vmatmul.mubr.bf16.gmra.mrb[0].mxu0 %v1198
      %v1256 = vpop.f32.mrb[0].mxu0
      %v1257 = vadd.f32 0.0, %v1256
      %v1258 = vpop.f32.mrb[0].mxu0
      %v1259 = vpop.f32.mrb[0].mxu0
      %v1260 = vadd.f32 0.0, %v1259
      %v1261 = vpop.f32.mrb[0].mxu0
      %1262 = vmatprep.mubr.bf16.mxu0 0
      %1263 = vmatmul.mubr.bf16.gmra.mrb[0].mxu0 %v1201
      %v1264 = vpop.f32.mrb[0].mxu0
      %v1265 = vadd.f32 0.0, %v1264
      %v1266 = vpop.f32.mrb[0].mxu0
      %v1267 = vpop.f32.mrb[0].mxu0
      %v1268 = vadd.f32 0.0, %v1267
      %v1269 = vpop.f32.mrb[0].mxu0
      %1270 = vdwg.mxu0
      %v1271 = vadd.f32 %v1038, %v1241
      %v1272 = vadd.f32 %v1039, %v1244
      %v1273 = vadd.f32 %v1040, %v1249
      %v1274 = vadd.f32 %v1041, %v1252
      %v1275 = vadd.f32 %v1042, %v1257
      %v1276 = vadd.f32 %v1043, %v1260
      %v1277 = vadd.f32 %v1044, %v1265
      %v1278 = vadd.f32 %v1045, %v1268
      %v1279 = vld [vmem:[%s369] sm:$0xf]
      %v1280 = vld [vmem:[%s369 + $0x8] sm:$0xf]
      %v1281 = vld [vmem:[%s369 + $0x10] sm:$0xf]
      %v1282 = vld [vmem:[%s369 + $0x18] sm:$0xf]
      %v1283 = vld [vmem:[%s369 + $0x20] sm:$0xf]
      %v1284 = vld [vmem:[%s369 + $0x28] sm:$0xf]
      %v1285 = vld [vmem:[%s369 + $0x30] sm:$0xf]
      %v1286 = vld [vmem:[%s369 + $0x38] sm:$0xf]
      %v1287 = vld [vmem:[%s374 + $0xc] sm:$0x3]
      %v1296 = vunpack.c.l.b16 %v1279
      %v1297 = vunpack.c.l.b16 %v1280
      %v1298 = vunpack.c.l.b16 %v1281
      %v1299 = vunpack.c.l.b16 %v1282
      %v1300 = vunpack.c.l.b16 %v1283
      %v1301 = vunpack.c.l.b16 %v1284
      %v1302 = vunpack.c.l.b16 %v1285
      %v1303 = vunpack.c.l.b16 %v1286
      %v1304 = vpack.c.b16 %v1297, %v1296
      %v1305 = vpack.c.b16 %v1299, %v1298
      %v1306 = vpack.c.b16 %v1301, %v1300
      %v1307 = vpack.c.b16 %v1303, %v1302
      %v1309 = vsel %vm434, %v1304, 0
      %v1312 = vsel %vm434, %v1305, 0
      %v1315 = vsel %vm434, %v1306, 0
      %v1318 = vsel %vm434, %v1307, 0
      %v1321 = vsel %vm447, %v1287, 0
      %1323 = vmatprep.subr.bf16.mxu0 0
      %1324 = vmatpush1.bf16.msra.mxu0 %v1321
      %1325 = vmatprep.subr.bf16.mxu0 0
      %1326 = vmatpush1.bf16.msra.mxu0 0
      %1327 = vmatprep.subr.bf16.mxu0 0
      %1328 = vmatpush1.bf16.msra.mxu0 0
      %1329 = vmatprep.subr.bf16.mxu0 0
      %1330 = vmatpush1.bf16.msra.mxu0 0
      %1331 = vmatprep.subr.bf16.mxu0 0
      %1332 = vmatpush1.bf16.msra.mxu0 0
      %1333 = vmatprep.subr.bf16.mxu0 0
      %1334 = vmatpush1.bf16.msra.mxu0 0
      %1335 = vmatprep.subr.bf16.mxu0 0
      %1336 = vmatpush1.bf16.msra.mxu0 0
      %1337 = vmatprep.subr.bf16.mxu0 0
      %1338 = vmatpush1.bf16.msra.mxu0 0
      %1339 = vmatprep.subr.bf16.mxu0 0
      %1340 = vmatpush1.bf16.msra.mxu0 0
      %1341 = vmatprep.subr.bf16.mxu0 0
      %1342 = vmatpush1.bf16.msra.mxu0 0
      %1343 = vmatprep.subr.bf16.mxu0 0
      %1344 = vmatpush1.bf16.msra.mxu0 0
      %1345 = vmatprep.subr.bf16.mxu0 0
      %1346 = vmatpush1.bf16.msra.mxu0 0
      %1347 = vmatprep.subr.bf16.mxu0 0
      %1348 = vmatpush1.bf16.msra.mxu0 0
      %1349 = vmatprep.subr.bf16.mxu0 0
      %1350 = vmatpush1.bf16.msra.mxu0 0
      %1351 = vmatprep.subr.bf16.mxu0 0
      %1352 = vmatpush1.bf16.msra.mxu0 0
      %1353 = vmatprep.subr.bf16.mxu0 0
      %1354 = vmatpush1.bf16.msra.mxu0 0
      %1355 = vmatprep.mubr.bf16.mxu0 0
      %1356 = vmatmul.mubr.bf16.gmra.mrb[0].mxu0 %v1309
      %v1357 = vpop.f32.mrb[0].mxu0
      %v1358 = vadd.f32 0.0, %v1357
      %v1359 = vpop.f32.mrb[0].mxu0
      %v1360 = vpop.f32.mrb[0].mxu0
      %v1361 = vadd.f32 0.0, %v1360
      %v1362 = vpop.f32.mrb[0].mxu0
      %1363 = vmatprep.mubr.bf16.mxu0 0
      %1364 = vmatmul.mubr.bf16.gmra.mrb[0].mxu0 %v1312
      %v1365 = vpop.f32.mrb[0].mxu0
      %v1366 = vadd.f32 0.0, %v1365
      %v1367 = vpop.f32.mrb[0].mxu0
      %v1368 = vpop.f32.mrb[0].mxu0
      %v1369 = vadd.f32 0.0, %v1368
      %v1370 = vpop.f32.mrb[0].mxu0
      %1371 = vmatprep.mubr.bf16.mxu0 0
      %1372 = vmatmul.mubr.bf16.gmra.mrb[0].mxu0 %v1315
      %v1373 = vpop.f32.mrb[0].mxu0
      %v1374 = vadd.f32 0.0, %v1373
      %v1375 = vpop.f32.mrb[0].mxu0
      %v1376 = vpop.f32.mrb[0].mxu0
      %v1377 = vadd.f32 0.0, %v1376
      %v1378 = vpop.f32.mrb[0].mxu0
      %1379 = vmatprep.mubr.bf16.mxu0 0
      %1380 = vmatmul.mubr.bf16.gmra.mrb[0].mxu0 %v1318
      %v1381 = vpop.f32.mrb[0].mxu0
      %v1382 = vadd.f32 0.0, %v1381
      %v1383 = vpop.f32.mrb[0].mxu0
      %v1384 = vpop.f32.mrb[0].mxu0
      %v1385 = vadd.f32 0.0, %v1384
      %v1386 = vpop.f32.mrb[0].mxu0
      %1387 = vdwg.mxu0
      %v1388 = vadd.f32 %v1271, %v1358
      %v1389 = vadd.f32 %v1272, %v1361
      %v1390 = vadd.f32 %v1273, %v1366
      %v1391 = vadd.f32 %v1274, %v1369
      %v1392 = vadd.f32 %v1275, %v1374
      %v1393 = vadd.f32 %v1276, %v1377
      %v1394 = vadd.f32 %v1277, %v1382
      %v1395 = vadd.f32 %v1278, %v1385
      %v1396 = vld [vmem:[%s374 + $0xc] sm:$0xc]
      %1397 = vrot.lane.b32.xlu0 %v1304, 124
      %v1398 = vpop.permute.xlu0 %1397
      %1399 = vrot.lane.b32.xlu0 %v1305, 124
      %v1400 = vpop.permute.xlu0 %1399
      %1401 = vrot.lane.b32.xlu0 %v1306, 124
      %v1402 = vpop.permute.xlu0 %1401
      %1403 = vrot.lane.b32.xlu0 %v1307, 124
      %v1404 = vpop.permute.xlu0 %1403
      %v1406 = vunpack.c.l.b16 %v1396
      %v1407 = vpack.c.b16 %v1406, %v1406
      %v1408 = vrot.slane %v1407, 2
      %v1410 = vsel %vm434, %v1398, 0
      %v1413 = vsel %vm434, %v1400, 0
      %v1416 = vsel %vm434, %v1402, 0
      %v1419 = vsel %vm434, %v1404, 0
      %v1422 = vsel %vm447, %v1408, 0
      %1424 = vmatprep.subr.bf16.mxu0 0
      %1425 = vmatpush1.bf16.msra.mxu0 %v1422
      %1426 = vmatprep.subr.bf16.mxu0 0
      %1427 = vmatpush1.bf16.msra.mxu0 0
      %1428 = vmatprep.subr.bf16.mxu0 0
      %1429 = vmatpush1.bf16.msra.mxu0 0
      %1430 = vmatprep.subr.bf16.mxu0 0
      %1431 = vmatpush1.bf16.msra.mxu0 0
      %1432 = vmatprep.subr.bf16.mxu0 0
      %1433 = vmatpush1.bf16.msra.mxu0 0
      %1434 = vmatprep.subr.bf16.mxu0 0
      %1435 = vmatpush1.bf16.msra.mxu0 0
      %1436 = vmatprep.subr.bf16.mxu0 0
      %1437 = vmatpush1.bf16.msra.mxu0 0
      %1438 = vmatprep.subr.bf16.mxu0 0
      %1439 = vmatpush1.bf16.msra.mxu0 0
      %1440 = vmatprep.subr.bf16.mxu0 0
      %1441 = vmatpush1.bf16.msra.mxu0 0
      %1442 = vmatprep.subr.bf16.mxu0 0
      %1443 = vmatpush1.bf16.msra.mxu0 0
      %1444 = vmatprep.subr.bf16.mxu0 0
      %1445 = vmatpush1.bf16.msra.mxu0 0
      %1446 = vmatprep.subr.bf16.mxu0 0
      %1447 = vmatpush1.bf16.msra.mxu0 0
      %1448 = vmatprep.subr.bf16.mxu0 0
      %1449 = vmatpush1.bf16.msra.mxu0 0
      %1450 = vmatprep.subr.bf16.mxu0 0
      %1451 = vmatpush1.bf16.msra.mxu0 0
      %1452 = vmatprep.subr.bf16.mxu0 0
      %1453 = vmatpush1.bf16.msra.mxu0 0
      %1454 = vmatprep.subr.bf16.mxu0 0
      %1455 = vmatpush1.bf16.msra.mxu0 0
      %1456 = vmatprep.mubr.bf16.mxu0 0
      %1457 = vmatmul.mubr.bf16.gmra.mrb[0].mxu0 %v1410
      %v1458 = vpop.f32.mrb[0].mxu0
      %v1459 = vadd.f32 0.0, %v1458
      %v1460 = vpop.f32.mrb[0].mxu0
      %v1461 = vpop.f32.mrb[0].mxu0
      %v1462 = vadd.f32 0.0, %v1461
      %v1463 = vpop.f32.mrb[0].mxu0
      %1464 = vmatprep.mubr.bf16.mxu0 0
      %1465 = vmatmul.mubr.bf16.gmra.mrb[0].mxu0 %v1413
      %v1466 = vpop.f32.mrb[0].mxu0
      %v1467 = vadd.f32 0.0, %v1466
      %v1468 = vpop.f32.mrb[0].mxu0
      %v1469 = vpop.f32.mrb[0].mxu0
      %v1470 = vadd.f32 0.0, %v1469
      %v1471 = vpop.f32.mrb[0].mxu0
      %1472 = vmatprep.mubr.bf16.mxu0 0
      %1473 = vmatmul.mubr.bf16.gmra.mrb[0].mxu0 %v1416
      %v1474 = vpop.f32.mrb[0].mxu0
      %v1475 = vadd.f32 0.0, %v1474
      %v1476 = vpop.f32.mrb[0].mxu0
      %v1477 = vpop.f32.mrb[0].mxu0
      %v1478 = vadd.f32 0.0, %v1477
      %v1479 = vpop.f32.mrb[0].mxu0
      %1480 = vmatprep.mubr.bf16.mxu0 0
      %1481 = vmatmul.mubr.bf16.gmra.mrb[0].mxu0 %v1419
      %v1482 = vpop.f32.mrb[0].mxu0
      %v1483 = vadd.f32 0.0, %v1482
      %v1484 = vpop.f32.mrb[0].mxu0
      %v1485 = vpop.f32.mrb[0].mxu0
      %v1486 = vadd.f32 0.0, %v1485
      %v1487 = vpop.f32.mrb[0].mxu0
      %1488 = vdwg.mxu0
      %v1489 = vadd.f32 %v1388, %v1459
      %v1490 = vadd.f32 %v1389, %v1462
      %v1491 = vadd.f32 %v1390, %v1467
      %v1492 = vadd.f32 %v1391, %v1470
      %v1493 = vadd.f32 %v1392, %v1475
      %v1494 = vadd.f32 %v1393, %v1478
      %v1495 = vadd.f32 %v1394, %v1483
      %v1496 = vadd.f32 %v1395, %v1486
      %v1497 = vld [vmem:[%s369] sm:$0xf]
      %v1498 = vld [vmem:[%s369 + $0x4] sm:$0x1]
      %v1499 = vld [vmem:[%s369 + $0x8] sm:$0xf]
      %v1500 = vld [vmem:[%s369 + $0xc] sm:$0x1]
      %v1501 = vld [vmem:[%s369 + $0x10] sm:$0xf]
      %v1502 = vld [vmem:[%s369 + $0x14] sm:$0x1]
      %v1503 = vld [vmem:[%s369 + $0x18] sm:$0xf]
      %v1504 = vld [vmem:[%s369 + $0x1c] sm:$0x1]
      %v1505 = vld [vmem:[%s369 + $0x20] sm:$0xf]
      %v1506 = vld [vmem:[%s369 + $0x24] sm:$0x1]
      %v1507 = vld [vmem:[%s369 + $0x28] sm:$0xf]
      %v1508 = vld [vmem:[%s369 + $0x2c] sm:$0x1]
      %v1509 = vld [vmem:[%s369 + $0x30] sm:$0xf]
      %v1510 = vld [vmem:[%s369 + $0x34] sm:$0x1]
      %v1511 = vld [vmem:[%s369 + $0x38] sm:$0xf]
      %v1512 = vld [vmem:[%s369 + $0x3c] sm:$0x1]
      %v1514 = vshrl.u32 %v1497, 16
      %v1516 = vrot.slane %v1514, 4
      %v1517 = vshll.u32 %v1497, 16
      %v1519 = vrot.slane %v1517, 5
      %v1520 = vor.u32 %v1516, %v1519
      %v1521 = vrot.slane %v1520, 4
      %v1523 = vshll.u32 %v1498, 16
      %v1525 = vrot.slane %v1523, 5
      %v1526 = vsel %vm614, %v1521, %v1525
      %v1528 = vshrl.u32 %v1499, 16
      %v1530 = vrot.slane %v1528, 4
      %v1531 = vshll.u32 %v1499, 16
      %v1533 = vrot.slane %v1531, 5
      %v1534 = vor.u32 %v1530, %v1533
      %v1535 = vrot.slane %v1534, 4
      %v1537 = vshll.u32 %v1500, 16
      %v1539 = vrot.slane %v1537, 5
      %v1540 = vsel %vm614, %v1535, %v1539
      %v1542 = vshrl.u32 %v1501, 16
      %v1544 = vrot.slane %v1542, 4
      %v1545 = vshll.u32 %v1501, 16
      %v1547 = vrot.slane %v1545, 5
      %v1548 = vor.u32 %v1544, %v1547
      %v1549 = vrot.slane %v1548, 4
      %v1551 = vshll.u32 %v1502, 16
      %v1553 = vrot.slane %v1551, 5
      %v1554 = vsel %vm614, %v1549, %v1553
      %v1556 = vshrl.u32 %v1503, 16
      %v1558 = vrot.slane %v1556, 4
      %v1559 = vshll.u32 %v1503, 16
      %v1561 = vrot.slane %v1559, 5
      %v1562 = vor.u32 %v1558, %v1561
      %v1563 = vrot.slane %v1562, 4
      %v1565 = vshll.u32 %v1504, 16
      %v1567 = vrot.slane %v1565, 5
      %v1568 = vsel %vm614, %v1563, %v1567
      %v1570 = vshrl.u32 %v1505, 16
      %v1572 = vrot.slane %v1570, 4
      %v1573 = vshll.u32 %v1505, 16
      %v1575 = vrot.slane %v1573, 5
      %v1576 = vor.u32 %v1572, %v1575
      %v1577 = vrot.slane %v1576, 4
      %v1579 = vshll.u32 %v1506, 16
      %v1581 = vrot.slane %v1579, 5
      %v1582 = vsel %vm614, %v1577, %v1581
      %v1584 = vshrl.u32 %v1507, 16
      %v1586 = vrot.slane %v1584, 4
      %v1587 = vshll.u32 %v1507, 16
      %v1589 = vrot.slane %v1587, 5
      %v1590 = vor.u32 %v1586, %v1589
      %v1591 = vrot.slane %v1590, 4
      %v1593 = vshll.u32 %v1508, 16
      %v1595 = vrot.slane %v1593, 5
      %v1596 = vsel %vm614, %v1591, %v1595
      %v1598 = vshrl.u32 %v1509, 16
      %v1600 = vrot.slane %v1598, 4
      %v1601 = vshll.u32 %v1509, 16
      %v1603 = vrot.slane %v1601, 5
      %v1604 = vor.u32 %v1600, %v1603
      %v1605 = vrot.slane %v1604, 4
      %v1607 = vshll.u32 %v1510, 16
      %v1609 = vrot.slane %v1607, 5
      %v1610 = vsel %vm614, %v1605, %v1609
      %v1612 = vshrl.u32 %v1511, 16
      %v1614 = vrot.slane %v1612, 4
      %v1615 = vshll.u32 %v1511, 16
      %v1617 = vrot.slane %v1615, 5
      %v1618 = vor.u32 %v1614, %v1617
      %v1619 = vrot.slane %v1618, 4
      %v1621 = vshll.u32 %v1512, 16
      %v1623 = vrot.slane %v1621, 5
      %v1624 = vsel %vm614, %v1619, %v1623
      %v1625 = vld [vmem:[%s374 + $0x10] sm:$0x3]
      %v1626 = vunpack.c.l.b16 %v1526
      %v1627 = vunpack.c.l.b16 %v1540
      %v1628 = vunpack.c.l.b16 %v1554
      %v1629 = vunpack.c.l.b16 %v1568
      %v1630 = vunpack.c.l.b16 %v1582
      %v1631 = vunpack.c.l.b16 %v1596
      %v1632 = vunpack.c.l.b16 %v1610
      %v1633 = vunpack.c.l.b16 %v1624
      %v1634 = vpack.c.b16 %v1627, %v1626
      %v1635 = vpack.c.b16 %v1629, %v1628
      %v1636 = vpack.c.b16 %v1631, %v1630
      %v1637 = vpack.c.b16 %v1633, %v1632
      %v1639 = vsel %vm434, %v1634, 0
      %v1642 = vsel %vm434, %v1635, 0
      %v1645 = vsel %vm434, %v1636, 0
      %v1648 = vsel %vm434, %v1637, 0
      %v1651 = vsel %vm447, %v1625, 0
      %1653 = vmatprep.subr.bf16.mxu0 0
      %1654 = vmatpush1.bf16.msra.mxu0 %v1651
      %1655 = vmatprep.subr.bf16.mxu0 0
      %1656 = vmatpush1.bf16.msra.mxu0 0
      %1657 = vmatprep.subr.bf16.mxu0 0
      %1658 = vmatpush1.bf16.msra.mxu0 0
      %1659 = vmatprep.subr.bf16.mxu0 0
      %1660 = vmatpush1.bf16.msra.mxu0 0
      %1661 = vmatprep.subr.bf16.mxu0 0
      %1662 = vmatpush1.bf16.msra.mxu0 0
      %1663 = vmatprep.subr.bf16.mxu0 0
      %1664 = vmatpush1.bf16.msra.mxu0 0
      %1665 = vmatprep.subr.bf16.mxu0 0
      %1666 = vmatpush1.bf16.msra.mxu0 0
      %1667 = vmatprep.subr.bf16.mxu0 0
      %1668 = vmatpush1.bf16.msra.mxu0 0
      %1669 = vmatprep.subr.bf16.mxu0 0
      %1670 = vmatpush1.bf16.msra.mxu0 0
      %1671 = vmatprep.subr.bf16.mxu0 0
      %1672 = vmatpush1.bf16.msra.mxu0 0
      %1673 = vmatprep.subr.bf16.mxu0 0
      %1674 = vmatpush1.bf16.msra.mxu0 0
      %1675 = vmatprep.subr.bf16.mxu0 0
      %1676 = vmatpush1.bf16.msra.mxu0 0
      %1677 = vmatprep.subr.bf16.mxu0 0
      %1678 = vmatpush1.bf16.msra.mxu0 0
      %1679 = vmatprep.subr.bf16.mxu0 0
      %1680 = vmatpush1.bf16.msra.mxu0 0
      %1681 = vmatprep.subr.bf16.mxu0 0
      %1682 = vmatpush1.bf16.msra.mxu0 0
      %1683 = vmatprep.subr.bf16.mxu0 0
      %1684 = vmatpush1.bf16.msra.mxu0 0
      %1685 = vmatprep.mubr.bf16.mxu0 0
      %1686 = vmatmul.mubr.bf16.gmra.mrb[0].mxu0 %v1639
      %v1687 = vpop.f32.mrb[0].mxu0
      %v1688 = vadd.f32 0.0, %v1687
      %v1689 = vpop.f32.mrb[0].mxu0
      %v1690 = vpop.f32.mrb[0].mxu0
      %v1691 = vadd.f32 0.0, %v1690
      %v1692 = vpop.f32.mrb[0].mxu0
      %1693 = vmatprep.mubr.bf16.mxu0 0
      %1694 = vmatmul.mubr.bf16.gmra.mrb[0].mxu0 %v1642
      %v1695 = vpop.f32.mrb[0].mxu0
      %v1696 = vadd.f32 0.0, %v1695
      %v1697 = vpop.f32.mrb[0].mxu0
      %v1698 = vpop.f32.mrb[0].mxu0
      %v1699 = vadd.f32 0.0, %v1698
      %v1700 = vpop.f32.mrb[0].mxu0
      %1701 = vmatprep.mubr.bf16.mxu0 0
      %1702 = vmatmul.mubr.bf16.gmra.mrb[0].mxu0 %v1645
      %v1703 = vpop.f32.mrb[0].mxu0
      %v1704 = vadd.f32 0.0, %v1703
      %v1705 = vpop.f32.mrb[0].mxu0
      %v1706 = vpop.f32.mrb[0].mxu0
      %v1707 = vadd.f32 0.0, %v1706
      %v1708 = vpop.f32.mrb[0].mxu0
      %1709 = vmatprep.mubr.bf16.mxu0 0
      %1710 = vmatmul.mubr.bf16.gmra.mrb[0].mxu0 %v1648
      %v1711 = vpop.f32.mrb[0].mxu0
      %v1712 = vadd.f32 0.0, %v1711
      %v1713 = vpop.f32.mrb[0].mxu0
      %v1714 = vpop.f32.mrb[0].mxu0
      %v1715 = vadd.f32 0.0, %v1714
      %v1716 = vpop.f32.mrb[0].mxu0
      %1717 = vdwg.mxu0
      %v1718 = vadd.f32 %v1489, %v1688
      %v1719 = vadd.f32 %v1490, %v1691
      %v1720 = vadd.f32 %v1491, %v1696
      %v1721 = vadd.f32 %v1492, %v1699
      %v1722 = vadd.f32 %v1493, %v1704
      %v1723 = vadd.f32 %v1494, %v1707
      %v1724 = vadd.f32 %v1495, %v1712
      %v1725 = vadd.f32 %v1496, %v1715
      %v1726 = vld [vmem:[%s377] sm:$0x1]
      %v1728 = vlaneseq
      %v1729 = vshrl.u32 %v1728, 7
      %v1730 = vsub.s32 0, %v1729
      %v1731 = vrot.slane %v1726, %v1730
      %v1733 = vadd.f32 %v1718, %v1731
      %v1734 = vadd.f32 %v1719, %v1731
      %v1735 = vadd.f32 %v1720, %v1731
      %v1736 = vadd.f32 %v1721, %v1731
      %v1737 = vadd.f32 %v1722, %v1731
      %v1738 = vadd.f32 %v1723, %v1731
      %v1739 = vadd.f32 %v1724, %v1731
      %v1740 = vadd.f32 %v1725, %v1731
      %1741 = vst.msk [vmem:[%s389] sm:$0xff] %vm434, %v1733
      %1742 = vst.msk [vmem:[%s389 + $0x8] sm:$0xff] %vm434, %v1734
      %1743 = vst.msk [vmem:[%s389 + $0x10] sm:$0xff] %vm434, %v1735
      %1744 = vst.msk [vmem:[%s389 + $0x18] sm:$0xff] %vm434, %v1736
      %1745 = vst.msk [vmem:[%s389 + $0x20] sm:$0xff] %vm434, %v1737
      %1746 = vst.msk [vmem:[%s389 + $0x28] sm:$0xff] %vm434, %v1738
      %1747 = vst.msk [vmem:[%s389 + $0x30] sm:$0xff] %vm434, %v1739
      %1748 = vst.msk [vmem:[%s389 + $0x38] sm:$0xff] %vm434, %v1740
      %s1749 = smul.u32 8, %s23
      %p1750 = scmp.lt.s32.totalorder %s22, 1
      %s1751 = scalar_select %p1750, %s22, 1
      %p1752 = scmp.lt.s32.totalorder %s1749, 7
      %s1753 = scalar_select %p1752, %s1749, 7
      %p1754 = scmp.lt.s32.totalorder %s21, 0
      %s1755 = scalar_select %p1754, %s21, 0
      %s1756 = sadd.s32 %s1755, %s1753
      %s1757 = smul.addr %s1751, 8
      %s1758 = sadd.s32 %s1756, %s1757
      %s1759 = smul.addr %s1758, 8
      %s1760 = scalar_lea.vmem %s5, %s1759
      // Predicated region
      $region41: #{conv2d_s2_p1.1} parent=39 // pred_check
        %p1761 = pneg %p193
      $region42: #{conv2d_s2_p1.1} parent=39 // pred_check_branch
        %1763 = sbr.rel (%p1761) target = $region44
      $region43: #{conv2d_s2_p1.1} parent=39 // pred_region
        %s1764 = smul.u32 8, %s23
      $region44: #{conv2d_s2_p1.1} parent=39 // pred_fallthru
        _
    $region40: #{conv2d_s2_p1.1} parent=5 // pred_fallthru
      _
    %p1765 = scmp.le.s32.totalorder 2, %s11
    // Predicated region
    $region45: #{conv2d_s2_p1.1} parent=5 // pred_check
      %p1766 = pneg %p1765
    $region46: #{conv2d_s2_p1.1} parent=5 // pred_check_branch
      %1768 = sbr.rel (%p1766) target = $region48
    $region47: #{conv2d_s2_p1.1} parent=5 // pred_region
      %s1769 = ssub.s32 %s11, 2
      // Predicated region
      $region49: #{conv2d_s2_p1.1} parent=47 // pred_check
        %p1770 = pneg %p199
      $region50: #{conv2d_s2_p1.1} parent=47 // pred_check_branch
        %1772 = sbr.rel (%p1770) target = $region52
      $region51: #{conv2d_s2_p1.1} parent=47 // pred_region
        %s1773 = smul.u32 8, %s26
        %p1774 = scmp.lt.s32.totalorder %s25, 1
        %s1775 = scalar_select %p1774, %s25, 1
        %p1776 = scmp.lt.s32.totalorder %s1773, 7
        %s1777 = scalar_select %p1776, %s1773, 7
        %p1778 = scmp.lt.s32.totalorder %s24, 0
        %s1779 = scalar_select %p1778, %s24, 0
        %s1780 = sadd.s32 %s1779, %s1777
        %s1781 = smul.addr %s1775, 8
        %s1782 = sadd.s32 %s1780, %s1781
        %s1783 = smul.addr %s1782, 8
        %s1784 = scalar_lea.vmem %s5, %s1783
      $region52: #{conv2d_s2_p1.1} parent=47 // pred_fallthru
        _
    $region48: #{conv2d_s2_p1.1} parent=5 // pred_fallthru
      _
  $region6: #{conv2d_s2_p1.1} parent=0 // loop_footer
    %s15 = sadd.s32 1, %s11
  $region7: #{conv2d_s2_p1.1} parent=0 // loop_footer_branch
    %10 = sbr.rel target = $region3
  $region8: #{conv2d_s2_p1.1} parent=0 // loop_exit
    _

</llo_original>
